<compile_context>
chip_gen: v5e
topology: v5e:2x2
jax: 0.10.0
libtpu: 0.0.40
codegen_flags: <defaults>
</compile_context>

<pallas_src>
import numpy as np

import jax
import jax.numpy as jnp
from jax.experimental import pallas as pl
from jax.experimental.pallas import tpu as pltpu

# ----------------------------- model dims -----------------------------------
INPUTS_HOURLY = 5
HIDDENS_HOURLY = 30
INPUTS_DAILY = 5
HIDDENS_DAILY = 30
OUTPUTS_DAILY = 1
FC_MID = 128

HP = 32          # padded hidden width (4*HP = 128 -> lane-dense gates)


def _round_up(n, m):
    return ((n + m - 1) // m) * m


# ----------------------------- fused Pallas kernel ---------------------------
def _netz_fused_kernel(
    x_h_ref, x_d_ref, sel_ref,
    wih_h_ref, whh_h_ref, b_h_ref,
    w1_ref, b1_ref, w2_ref, b2_ref, w3_ref, b3_ref,
    wih_d_ref, whh_d_ref, b_d_ref,
    w4_ref, b4_ref, w5_ref, b5_ref,
    out_h_ref, out_d_ref,
    xproj_h_sc, xproj_d_sc,
):
    f32 = jnp.float32

    def sigmoid(x):
        # tanh identity: one EUP push instead of exp + reciprocal.
        return 0.5 * jnp.tanh(0.5 * x) + 0.5

    def run_lstm(xproj_ref, whh, h0, T, B):
        # xproj_ref holds x_t @ W_ih^T + (b_ih + b_hh) for every time step.
        h = h0
        c = jnp.zeros_like(h0)
        for t in range(T):                               # static, fully unrolled
            gates = xproj_ref[pl.ds(t * B, B), :] + jnp.dot(
                h, whh, preferred_element_type=f32)      # (B, 4*HP)
            i_g = sigmoid(gates[:, 0 * HP:1 * HP])
            f_g = sigmoid(gates[:, 1 * HP:2 * HP])
            g_g = jnp.tanh(gates[:, 2 * HP:3 * HP])
            o_g = sigmoid(gates[:, 3 * HP:4 * HP])
            c = f_g * c + i_g * g_g
            h = o_g * jnp.tanh(c)
        return h

    # ---------------- lower (hourly) branch ----------------
    B_h = out_h_ref.shape[0]
    T_h = x_h_ref.shape[0] // B_h

    # One big matmul for the input projection of ALL hourly time steps.
    xproj_h_sc[...] = (
        jnp.dot(x_h_ref[...], wih_h_ref[...], preferred_element_type=f32)
        + b_h_ref[...])

    h0_h = jnp.zeros((B_h, HP), f32)
    hn_h = run_lstm(xproj_h_sc, whh_h_ref[...], h0_h, T_h, B_h)

    w = jnp.maximum(hn_h, 0.0)                                        # relu
    z1 = jnp.dot(w, w1_ref[...], preferred_element_type=f32) + b1_ref[...]
    z2 = jnp.dot(z1, w2_ref[...], preferred_element_type=f32) + b2_ref[...]
    weights_hourly = jnp.maximum(z2, 0.0)                             # relu
    out_h_ref[...] = (
        jnp.dot(weights_hourly, w3_ref[...], preferred_element_type=f32)
        + b3_ref[...])

    # ------ glue: pick rows 0, 16, 32, ... as daily h0 (selection matmul) ----
    h0_d = jnp.dot(sel_ref[...], weights_hourly, preferred_element_type=f32)

    # ---------------- upper (daily) branch ----------------
    B_d = out_d_ref.shape[0]
    T_d = x_d_ref.shape[0] // B_d

    xproj_d_sc[...] = (
        jnp.dot(x_d_ref[...], wih_d_ref[...], preferred_element_type=f32)
        + b_d_ref[...])

    hn_d = run_lstm(xproj_d_sc, whh_d_ref[...], h0_d, T_d, B_d)

    o = jnp.maximum(hn_d, 0.0)
    o = jnp.maximum(
        jnp.dot(o, w4_ref[...], preferred_element_type=f32) + b4_ref[...], 0.0)
    out_d_ref[...] = (
        jnp.dot(o, w5_ref[...], preferred_element_type=f32) + b5_ref[...])


# ----------------------------- parameter prep --------------------------------
def _pad_last(a, to):
    pad = to - a.shape[-1]
    if pad == 0:
        return a
    return jnp.pad(a, [(0, 0)] * (a.ndim - 1) + [(0, pad)])


def _pad_gates(w4h, H, HPc):
    """(..., 4*H) -> (..., 4*HPc), zero-padding each gate block to width HPc."""
    parts = jnp.split(w4h, 4, axis=-1)
    return jnp.concatenate([_pad_last(g, HPc) for g in parts], axis=-1)


def prepare_params(p):
    """Transpose / merge biases / zero-pad ONCE (done outside the jitted fwd)."""
    H = HIDDENS_HOURLY                       # == HIDDENS_DAILY == 30

    def prep_lstm(wih, whh, bih, bhh):
        wih_t = _pad_gates(wih.T, H, HP)                       # (I, 4*HP)
        whh_t = _pad_gates(whh.T, H, HP)                       # (H, 4*HP)
        whh_t = jnp.pad(whh_t, ((0, HP - H), (0, 0)))          # (HP, 4*HP)
        b = _pad_gates((bih + bhh).reshape(1, -1), H, HP)      # (1, 4*HP)
        return wih_t, whh_t, b

    wih_h, whh_h, b_h = prep_lstm(p["lstm_h_wih"], p["lstm_h_whh"],
                                  p["lstm_h_bih"], p["lstm_h_bhh"])
    wih_d, whh_d, b_d = prep_lstm(p["lstm_d_wih"], p["lstm_d_whh"],
                                  p["lstm_d_bih"], p["lstm_d_bhh"])
    return dict(
        wih_h=wih_h, whh_h=whh_h, b_h=b_h,
        w1=jnp.pad(p["fc1_w"].T, ((0, HP - H), (0, 0))),       # (HP, 128)
        b1=p["fc1_b"].reshape(1, -1),
        w2=_pad_last(p["fc2_w"].T, HP),                        # (128, HP)
        b2=_pad_last(p["fc2_b"].reshape(1, -1), HP),
        w3=jnp.pad(p["fc3_w"].T, ((0, HP - H), (0, 0))),       # (HP, 1)
        b3=p["fc3_b"].reshape(1, -1),
        wih_d=wih_d, whh_d=whh_d, b_d=b_d,
        w4=jnp.pad(p["fc4_w"].T, ((0, HP - H), (0, 0))),       # (HP, 128)
        b4=p["fc4_b"].reshape(1, -1),
        w5=p["fc5_w"].T,                                       # (128, 1)
        b5=p["fc5_b"].reshape(1, -1),
    )


# ----------------------------- forward (Pallas) ------------------------------
@jax.jit
def netz_forward(prepped, x_hourly, x_daily):
    B_h, T_h, I_h = x_hourly.shape
    B_d, T_d, I_d = x_daily.shape

    B_hp = _round_up(B_h, 8)
    B_dp = _round_up(B_d, 8)

    # Selection matrix picking rows 0, 16, 32, ... (the "i % 16 == 0" glue).
    n_sel = min((B_h + 15) // 16, B_d)
    sel_np = np.zeros((B_dp, B_hp), np.float32)
    rows = np.arange(n_sel)
    sel_np[rows, rows * 16] = 1.0
    sel = jnp.asarray(sel_np)

    # Time-major, batch-padded, flattened activations (one tiny XLA copy each).
    xh = jnp.pad(x_hourly, ((0, B_hp - B_h), (0, 0), (0, 0)))
    xh = jnp.transpose(xh, (1, 0, 2)).reshape(T_h * B_hp, I_h)
    xd = jnp.pad(x_daily, ((0, B_dp - B_d), (0, 0), (0, 0)))
    xd = jnp.transpose(xd, (1, 0, 2)).reshape(T_d * B_dp, I_d)

    out_h, out_d = pl.pallas_call(
        _netz_fused_kernel,
        out_shape=(jax.ShapeDtypeStruct((B_hp, 1), jnp.float32),
                   jax.ShapeDtypeStruct((B_dp, 1), jnp.float32)),
        scratch_shapes=[
            pltpu.VMEM((T_h * B_hp, 4 * HP), jnp.float32),   # hourly x-proj
            pltpu.VMEM((T_d * B_dp, 4 * HP), jnp.float32),   # daily  x-proj
        ],
    )(xh, xd, sel,
      prepped["wih_h"], prepped["whh_h"], prepped["b_h"],
      prepped["w1"], prepped["b1"], prepped["w2"], prepped["b2"],
      prepped["w3"], prepped["b3"],
      prepped["wih_d"], prepped["whh_d"], prepped["b_d"],
      prepped["w4"], prepped["b4"], prepped["w5"], prepped["b5"])

    return out_h[:B_h], out_d[:B_d]


# ----------------------------- parameter init --------------------------------
def init_params(key):
    ks = jax.random.split(key, 18)
    s = 0.1

    def rnd(k, shape):
        return jax.random.normal(k, shape, jnp.float32) * s

    p = {}
    # hourly LSTM (PyTorch layout: W_ih (4H, I), W_hh (4H, H), biases (4H,))
    p["lstm_h_wih"] = rnd(ks[0], (4 * HIDDENS_HOURLY, INPUTS_HOURLY))
    p["lstm_h_whh"] = rnd(ks[1], (4 * HIDDENS_HOURLY, HIDDENS_HOURLY))
    p["lstm_h_bih"] = rnd(ks[2], (4 * HIDDENS_HOURLY,))
    p["lstm_h_bhh"] = rnd(ks[3], (4 * HIDDENS_HOURLY,))
    # fc1 / fc2 / fc3 (PyTorch Linear: W (out, in), b (out,))
    p["fc1_w"] = rnd(ks[4], (FC_MID, HIDDENS_HOURLY))
    p["fc1_b"] = rnd(ks[5], (FC_MID,))
    p["fc2_w"] = rnd(ks[6], (HIDDENS_DAILY, FC_MID))
    p["fc2_b"] = rnd(ks[7], (HIDDENS_DAILY,))
    p["fc3_w"] = rnd(ks[8], (1, HIDDENS_DAILY))
    p["fc3_b"] = rnd(ks[9], (1,))
    # daily LSTM
    p["lstm_d_wih"] = rnd(ks[10], (4 * HIDDENS_DAILY, INPUTS_DAILY))
    p["lstm_d_whh"] = rnd(ks[11], (4 * HIDDENS_DAILY, HIDDENS_DAILY))
    p["lstm_d_bih"] = rnd(ks[12], (4 * HIDDENS_DAILY,))
    p["lstm_d_bhh"] = rnd(ks[13], (4 * HIDDENS_DAILY,))
    # fc4 / fc5
    p["fc4_w"] = rnd(ks[14], (FC_MID, HIDDENS_DAILY))
    p["fc4_b"] = rnd(ks[15], (FC_MID,))
    p["fc5_w"] = rnd(ks[16], (OUTPUTS_DAILY, FC_MID))
    p["fc5_b"] = rnd(ks[17], (OUTPUTS_DAILY,))
    return p


# ----------------------------- pure-JAX reference ----------------------------
def _lstm_ref(x_bti, w_ih, w_hh, b_ih, b_hh, h0):
    c0 = jnp.zeros_like(h0)

    def step(carry, x_t):
        h, c = carry
        gates = x_t @ w_ih.T + b_ih + h @ w_hh.T + b_hh
        i, f, g, o = jnp.split(gates, 4, axis=-1)
        c = jax.nn.sigmoid(f) * c + jax.nn.sigmoid(i) * jnp.tanh(g)
        h = jax.nn.sigmoid(o) * jnp.tanh(c)
        return (h, c), None

    (h, _), _ = jax.lax.scan(step, (h0, c0), jnp.transpose(x_bti, (1, 0, 2)))
    return h


def netz_forward_ref(p, x_hourly, x_daily):
    B_h = x_hourly.shape[0]
    hn_h = _lstm_ref(x_hourly, p["lstm_h_wih"], p["lstm_h_whh"],
                     p["lstm_h_bih"], p["lstm_h_bhh"],
                     jnp.zeros((B_h, HIDDENS_HOURLY), jnp.float32))
    w = jnp.maximum(hn_h, 0.0)
    w = w @ p["fc1_w"].T + p["fc1_b"]
    w = w @ p["fc2_w"].T + p["fc2_b"]
    w = jnp.maximum(w, 0.0)
    output_hourly = w @ p["fc3_w"].T + p["fc3_b"]
    h0_daily = w[::16]
    hn_d = _lstm_ref(x_daily, p["lstm_d_wih"], p["lstm_d_whh"],
                     p["lstm_d_bih"], p["lstm_d_bhh"], h0_daily)
    o = jnp.maximum(hn_d, 0.0)
    o = jnp.maximum(o @ p["fc4_w"].T + p["fc4_b"], 0.0)
    o = o @ p["fc5_w"].T + p["fc5_b"]
    return output_hourly, o


# ----------------------------- main -------------------------------------------
if __name__ == "__main__":
    key = jax.random.PRNGKey(0)
    k_p, k_xh, k_xd = jax.random.split(key, 3)

    params = init_params(k_p)
    prepped = prepare_params(params)

    B_HOURLY, SEQ_HOURLY = 32, 8          # 32 hourly rows -> 2 daily rows (i % 16 == 0)
    B_DAILY, SEQ_DAILY = 2, 6

    x_hourly = jax.random.normal(
        k_xh, (B_HOURLY, SEQ_HOURLY, INPUTS_HOURLY), jnp.float32)
    x_daily = jax.random.normal(
        k_xd, (B_DAILY, SEQ_DAILY, INPUTS_DAILY), jnp.float32)

    out_hourly, out_daily = netz_forward(prepped, x_hourly, x_daily)
    jax.block_until_ready((out_hourly, out_daily))

    ref_hourly, ref_daily = netz_forward_ref(params, x_hourly, x_daily)

    assert out_hourly.shape == (B_HOURLY, 1)
    assert out_daily.shape == (B_DAILY, OUTPUTS_DAILY)
    assert jnp.allclose(out_hourly, ref_hourly, rtol=1e-2, atol=1e-3)
    assert jnp.allclose(out_daily, ref_daily, rtol=1e-2, atol=1e-3)

    print("KERNEL_OK")
</pallas_src>

<mosaic_0001>
module attributes {stable_mosaic.version = 11 : i64} {
  func.func @_netz_fused_kernel(%arg0: memref<256x5xf32, #tpu.memory_space<vmem>>, %arg1: memref<48x5xf32, #tpu.memory_space<vmem>>, %arg2: memref<8x32xf32, #tpu.memory_space<vmem>>, %arg3: memref<5x128xf32, #tpu.memory_space<vmem>>, %arg4: memref<32x128xf32, #tpu.memory_space<vmem>>, %arg5: memref<1x128xf32, #tpu.memory_space<vmem>>, %arg6: memref<32x128xf32, #tpu.memory_space<vmem>>, %arg7: memref<1x128xf32, #tpu.memory_space<vmem>>, %arg8: memref<128x32xf32, #tpu.memory_space<vmem>>, %arg9: memref<1x32xf32, #tpu.memory_space<vmem>>, %arg10: memref<32x1xf32, #tpu.memory_space<vmem>>, %arg11: memref<1x1xf32, #tpu.memory_space<vmem>>, %arg12: memref<5x128xf32, #tpu.memory_space<vmem>>, %arg13: memref<32x128xf32, #tpu.memory_space<vmem>>, %arg14: memref<1x128xf32, #tpu.memory_space<vmem>>, %arg15: memref<32x128xf32, #tpu.memory_space<vmem>>, %arg16: memref<1x128xf32, #tpu.memory_space<vmem>>, %arg17: memref<128x1xf32, #tpu.memory_space<vmem>>, %arg18: memref<1x1xf32, #tpu.memory_space<vmem>>, %arg19: memref<32x1xf32, #tpu.memory_space<vmem>>, %arg20: memref<8x1xf32, #tpu.memory_space<vmem>>, %arg21: memref<256x128xf32, #tpu.memory_space<vmem>>, %arg22: memref<48x128xf32, #tpu.memory_space<vmem>>) attributes {dimension_semantics = [], scalar_prefetch = 0 : i64, scratch_operands = 2 : i64, tpu.core_type = #tpu.core_type<tc>} {
    %c0 = arith.constant 0 : index
    %c0_0 = arith.constant 0 : index
    %0 = vector.load %arg0[%c0, %c0_0] : memref<256x5xf32, #tpu.memory_space<vmem>>, vector<256x5xf32>
    %c0_1 = arith.constant 0 : index
    %c0_2 = arith.constant 0 : index
    %1 = vector.load %arg3[%c0_1, %c0_2] : memref<5x128xf32, #tpu.memory_space<vmem>>, vector<5x128xf32>
    %cst = arith.constant dense<0.000000e+00> : vector<256x128xf32>
    %2 = tpu.matmul %0, %1, %cst {dimension_numbers = #tpu.dot_dimension_numbers<[1], [0], [0], [1], [0, 0, 1, 1], [], []>} : vector<256x5xf32>, vector<5x128xf32>, vector<256x128xf32> -> vector<256x128xf32>
    %c0_3 = arith.constant 0 : index
    %c0_4 = arith.constant 0 : index
    %3 = vector.load %arg5[%c0_3, %c0_4] : memref<1x128xf32, #tpu.memory_space<vmem>>, vector<1x128xf32>
    %4 = vector.broadcast %3 : vector<1x128xf32> to vector<256x128xf32>
    %5 = arith.addf %2, %4 : vector<256x128xf32>
    %c0_5 = arith.constant 0 : index
    %c0_6 = arith.constant 0 : index
    %6 = vector.load %arg21[%c0_5, %c0_6] : memref<256x128xf32, #tpu.memory_space<vmem>>, vector<256x128xf32>
    tpu.vector_store %arg21[%c0_5, %c0_6], %5 {strides = array<i32>} : memref<256x128xf32, #tpu.memory_space<vmem>>, vector<256x128xf32>,
    %cst_7 = arith.constant 0.000000e+00 : f32
    %7 = vector.broadcast %cst_7 : f32 to vector<32x32xf32>
    %c0_8 = arith.constant 0 : index
    %c0_9 = arith.constant 0 : index
    %8 = vector.load %arg4[%c0_8, %c0_9] : memref<32x128xf32, #tpu.memory_space<vmem>>, vector<32x128xf32>
    %cst_10 = arith.constant 0.000000e+00 : f32
    %9 = vector.broadcast %cst_10 : f32 to vector<32x32xf32>
    %c0_11 = arith.constant 0 : index
    %c0_12 = arith.constant 0 : index
    %10 = vector.load %arg21[%c0_11, %c0_12] : memref<256x128xf32, #tpu.memory_space<vmem>>, vector<32x128xf32>
    %cst_13 = arith.constant dense<0.000000e+00> : vector<32x128xf32>
    %11 = tpu.matmul %7, %8, %cst_13 {dimension_numbers = #tpu.dot_dimension_numbers<[1], [0], [0], [1], [0, 0, 1, 1], [], []>} : vector<32x32xf32>, vector<32x128xf32>, vector<32x128xf32> -> vector<32x128xf32>
    %12 = arith.addf %10, %11 : vector<32x128xf32>
    %13 = vector.extract_strided_slice %12 {offsets = [0, 0], sizes = [32, 32], strides = [1, 1]} : vector<32x128xf32> to vector<32x32xf32>
    %cst_14 = arith.constant 5.000000e-01 : f32
    %14 = vector.broadcast %cst_14 : f32 to vector<32x32xf32>
    %15 = arith.mulf %14, %13 : vector<32x32xf32>
    %16 = math.tanh %15 : vector<32x32xf32>
    %cst_15 = arith.constant 5.000000e-01 : f32
    %17 = vector.broadcast %cst_15 : f32 to vector<32x32xf32>
    %18 = arith.mulf %17, %16 : vector<32x32xf32>
    %cst_16 = arith.constant 5.000000e-01 : f32
    %19 = vector.broadcast %cst_16 : f32 to vector<32x32xf32>
    %20 = arith.addf %18, %19 : vector<32x32xf32>
    %21 = vector.extract_strided_slice %12 {offsets = [0, 32], sizes = [32, 32], strides = [1, 1]} : vector<32x128xf32> to vector<32x32xf32>
    %cst_17 = arith.constant 5.000000e-01 : f32
    %22 = vector.broadcast %cst_17 : f32 to vector<32x32xf32>
    %23 = arith.mulf %22, %21 : vector<32x32xf32>
    %24 = math.tanh %23 : vector<32x32xf32>
    %cst_18 = arith.constant 5.000000e-01 : f32
    %25 = vector.broadcast %cst_18 : f32 to vector<32x32xf32>
    %26 = arith.mulf %25, %24 : vector<32x32xf32>
    %cst_19 = arith.constant 5.000000e-01 : f32
    %27 = vector.broadcast %cst_19 : f32 to vector<32x32xf32>
    %28 = arith.addf %26, %27 : vector<32x32xf32>
    %29 = vector.extract_strided_slice %12 {offsets = [0, 64], sizes = [32, 32], strides = [1, 1]} : vector<32x128xf32> to vector<32x32xf32>
    %30 = math.tanh %29 : vector<32x32xf32>
    %31 = vector.extract_strided_slice %12 {offsets = [0, 96], sizes = [32, 32], strides = [1, 1]} : vector<32x128xf32> to vector<32x32xf32>
    %cst_20 = arith.constant 5.000000e-01 : f32
    %32 = vector.broadcast %cst_20 : f32 to vector<32x32xf32>
    %33 = arith.mulf %32, %31 : vector<32x32xf32>
    %34 = math.tanh %33 : vector<32x32xf32>
    %cst_21 = arith.constant 5.000000e-01 : f32
    %35 = vector.broadcast %cst_21 : f32 to vector<32x32xf32>
    %36 = arith.mulf %35, %34 : vector<32x32xf32>
    %cst_22 = arith.constant 5.000000e-01 : f32
    %37 = vector.broadcast %cst_22 : f32 to vector<32x32xf32>
    %38 = arith.addf %36, %37 : vector<32x32xf32>
    %39 = arith.mulf %28, %9 : vector<32x32xf32>
    %40 = arith.mulf %20, %30 : vector<32x32xf32>
    %41 = arith.addf %39, %40 : vector<32x32xf32>
    %42 = math.tanh %41 : vector<32x32xf32>
    %43 = arith.mulf %38, %42 : vector<32x32xf32>
    %c32 = arith.constant 32 : index
    %c0_23 = arith.constant 0 : index
    %44 = vector.load %arg21[%c32, %c0_23] : memref<256x128xf32, #tpu.memory_space<vmem>>, vector<32x128xf32>
    %cst_24 = arith.constant dense<0.000000e+00> : vector<32x128xf32>
    %45 = tpu.matmul %43, %8, %cst_24 {dimension_numbers = #tpu.dot_dimension_numbers<[1], [0], [0], [1], [0, 0, 1, 1], [], []>} : vector<32x32xf32>, vector<32x128xf32>, vector<32x128xf32> -> vector<32x128xf32>
    %46 = arith.addf %44, %45 : vector<32x128xf32>
    %47 = vector.extract_strided_slice %46 {offsets = [0, 0], sizes = [32, 32], strides = [1, 1]} : vector<32x128xf32> to vector<32x32xf32>
    %cst_25 = arith.constant 5.000000e-01 : f32
    %48 = vector.broadcast %cst_25 : f32 to vector<32x32xf32>
    %49 = arith.mulf %48, %47 : vector<32x32xf32>
    %50 = math.tanh %49 : vector<32x32xf32>
    %cst_26 = arith.constant 5.000000e-01 : f32
    %51 = vector.broadcast %cst_26 : f32 to vector<32x32xf32>
    %52 = arith.mulf %51, %50 : vector<32x32xf32>
    %cst_27 = arith.constant 5.000000e-01 : f32
    %53 = vector.broadcast %cst_27 : f32 to vector<32x32xf32>
    %54 = arith.addf %52, %53 : vector<32x32xf32>
    %55 = vector.extract_strided_slice %46 {offsets = [0, 32], sizes = [32, 32], strides = [1, 1]} : vector<32x128xf32> to vector<32x32xf32>
    %cst_28 = arith.constant 5.000000e-01 : f32
    %56 = vector.broadcast %cst_28 : f32 to vector<32x32xf32>
    %57 = arith.mulf %56, %55 : vector<32x32xf32>
    %58 = math.tanh %57 : vector<32x32xf32>
    %cst_29 = arith.constant 5.000000e-01 : f32
    %59 = vector.broadcast %cst_29 : f32 to vector<32x32xf32>
    %60 = arith.mulf %59, %58 : vector<32x32xf32>
    %cst_30 = arith.constant 5.000000e-01 : f32
    %61 = vector.broadcast %cst_30 : f32 to vector<32x32xf32>
    %62 = arith.addf %60, %61 : vector<32x32xf32>
    %63 = vector.extract_strided_slice %46 {offsets = [0, 64], sizes = [32, 32], strides = [1, 1]} : vector<32x128xf32> to vector<32x32xf32>
    %64 = math.tanh %63 : vector<32x32xf32>
    %65 = vector.extract_strided_slice %46 {offsets = [0, 96], sizes = [32, 32], strides = [1, 1]} : vector<32x128xf32> to vector<32x32xf32>
    %cst_31 = arith.constant 5.000000e-01 : f32
    %66 = vector.broadcast %cst_31 : f32 to vector<32x32xf32>
    %67 = arith.mulf %66, %65 : vector<32x32xf32>
    %68 = math.tanh %67 : vector<32x32xf32>
    %cst_32 = arith.constant 5.000000e-01 : f32
    %69 = vector.broadcast %cst_32 : f32 to vector<32x32xf32>
    %70 = arith.mulf %69, %68 : vector<32x32xf32>
    %cst_33 = arith.constant 5.000000e-01 : f32
    %71 = vector.broadcast %cst_33 : f32 to vector<32x32xf32>
    %72 = arith.addf %70, %71 : vector<32x32xf32>
    %73 = arith.mulf %62, %41 : vector<32x32xf32>
    %74 = arith.mulf %54, %64 : vector<32x32xf32>
    %75 = arith.addf %73, %74 : vector<32x32xf32>
    %76 = math.tanh %75 : vector<32x32xf32>
    %77 = arith.mulf %72, %76 : vector<32x32xf32>
    %c64 = arith.constant 64 : index
    %c0_34 = arith.constant 0 : index
    %78 = vector.load %arg21[%c64, %c0_34] : memref<256x128xf32, #tpu.memory_space<vmem>>, vector<32x128xf32>
    %cst_35 = arith.constant dense<0.000000e+00> : vector<32x128xf32>
    %79 = tpu.matmul %77, %8, %cst_35 {dimension_numbers = #tpu.dot_dimension_numbers<[1], [0], [0], [1], [0, 0, 1, 1], [], []>} : vector<32x32xf32>, vector<32x128xf32>, vector<32x128xf32> -> vector<32x128xf32>
    %80 = arith.addf %78, %79 : vector<32x128xf32>
    %81 = vector.extract_strided_slice %80 {offsets = [0, 0], sizes = [32, 32], strides = [1, 1]} : vector<32x128xf32> to vector<32x32xf32>
    %cst_36 = arith.constant 5.000000e-01 : f32
    %82 = vector.broadcast %cst_36 : f32 to vector<32x32xf32>
    %83 = arith.mulf %82, %81 : vector<32x32xf32>
    %84 = math.tanh %83 : vector<32x32xf32>
    %cst_37 = arith.constant 5.000000e-01 : f32
    %85 = vector.broadcast %cst_37 : f32 to vector<32x32xf32>
    %86 = arith.mulf %85, %84 : vector<32x32xf32>
    %cst_38 = arith.constant 5.000000e-01 : f32
    %87 = vector.broadcast %cst_38 : f32 to vector<32x32xf32>
    %88 = arith.addf %86, %87 : vector<32x32xf32>
    %89 = vector.extract_strided_slice %80 {offsets = [0, 32], sizes = [32, 32], strides = [1, 1]} : vector<32x128xf32> to vector<32x32xf32>
    %cst_39 = arith.constant 5.000000e-01 : f32
    %90 = vector.broadcast %cst_39 : f32 to vector<32x32xf32>
    %91 = arith.mulf %90, %89 : vector<32x32xf32>
    %92 = math.tanh %91 : vector<32x32xf32>
    %cst_40 = arith.constant 5.000000e-01 : f32
    %93 = vector.broadcast %cst_40 : f32 to vector<32x32xf32>
    %94 = arith.mulf %93, %92 : vector<32x32xf32>
    %cst_41 = arith.constant 5.000000e-01 : f32
    %95 = vector.broadcast %cst_41 : f32 to vector<32x32xf32>
    %96 = arith.addf %94, %95 : vector<32x32xf32>
    %97 = vector.extract_strided_slice %80 {offsets = [0, 64], sizes = [32, 32], strides = [1, 1]} : vector<32x128xf32> to vector<32x32xf32>
    %98 = math.tanh %97 : vector<32x32xf32>
    %99 = vector.extract_strided_slice %80 {offsets = [0, 96], sizes = [32, 32], strides = [1, 1]} : vector<32x128xf32> to vector<32x32xf32>
    %cst_42 = arith.constant 5.000000e-01 : f32
    %100 = vector.broadcast %cst_42 : f32 to vector<32x32xf32>
    %101 = arith.mulf %100, %99 : vector<32x32xf32>
    %102 = math.tanh %101 : vector<32x32xf32>
    %cst_43 = arith.constant 5.000000e-01 : f32
    %103 = vector.broadcast %cst_43 : f32 to vector<32x32xf32>
    %104 = arith.mulf %103, %102 : vector<32x32xf32>
    %cst_44 = arith.constant 5.000000e-01 : f32
    %105 = vector.broadcast %cst_44 : f32 to vector<32x32xf32>
    %106 = arith.addf %104, %105 : vector<32x32xf32>
    %107 = arith.mulf %96, %75 : vector<32x32xf32>
    %108 = arith.mulf %88, %98 : vector<32x32xf32>
    %109 = arith.addf %107, %108 : vector<32x32xf32>
    %110 = math.tanh %109 : vector<32x32xf32>
    %111 = arith.mulf %106, %110 : vector<32x32xf32>
    %c96 = arith.constant 96 : index
    %c0_45 = arith.constant 0 : index
    %112 = vector.load %arg21[%c96, %c0_45] : memref<256x128xf32, #tpu.memory_space<vmem>>, vector<32x128xf32>
    %cst_46 = arith.constant dense<0.000000e+00> : vector<32x128xf32>
    %113 = tpu.matmul %111, %8, %cst_46 {dimension_numbers = #tpu.dot_dimension_numbers<[1], [0], [0], [1], [0, 0, 1, 1], [], []>} : vector<32x32xf32>, vector<32x128xf32>, vector<32x128xf32> -> vector<32x128xf32>
    %114 = arith.addf %112, %113 : vector<32x128xf32>
    %115 = vector.extract_strided_slice %114 {offsets = [0, 0], sizes = [32, 32], strides = [1, 1]} : vector<32x128xf32> to vector<32x32xf32>
    %cst_47 = arith.constant 5.000000e-01 : f32
    %116 = vector.broadcast %cst_47 : f32 to vector<32x32xf32>
    %117 = arith.mulf %116, %115 : vector<32x32xf32>
    %118 = math.tanh %117 : vector<32x32xf32>
    %cst_48 = arith.constant 5.000000e-01 : f32
    %119 = vector.broadcast %cst_48 : f32 to vector<32x32xf32>
    %120 = arith.mulf %119, %118 : vector<32x32xf32>
    %cst_49 = arith.constant 5.000000e-01 : f32
    %121 = vector.broadcast %cst_49 : f32 to vector<32x32xf32>
    %122 = arith.addf %120, %121 : vector<32x32xf32>
    %123 = vector.extract_strided_slice %114 {offsets = [0, 32], sizes = [32, 32], strides = [1, 1]} : vector<32x128xf32> to vector<32x32xf32>
    %cst_50 = arith.constant 5.000000e-01 : f32
    %124 = vector.broadcast %cst_50 : f32 to vector<32x32xf32>
    %125 = arith.mulf %124, %123 : vector<32x32xf32>
    %126 = math.tanh %125 : vector<32x32xf32>
    %cst_51 = arith.constant 5.000000e-01 : f32
    %127 = vector.broadcast %cst_51 : f32 to vector<32x32xf32>
    %128 = arith.mulf %127, %126 : vector<32x32xf32>
    %cst_52 = arith.constant 5.000000e-01 : f32
    %129 = vector.broadcast %cst_52 : f32 to vector<32x32xf32>
    %130 = arith.addf %128, %129 : vector<32x32xf32>
    %131 = vector.extract_strided_slice %114 {offsets = [0, 64], sizes = [32, 32], strides = [1, 1]} : vector<32x128xf32> to vector<32x32xf32>
    %132 = math.tanh %131 : vector<32x32xf32>
    %133 = vector.extract_strided_slice %114 {offsets = [0, 96], sizes = [32, 32], strides = [1, 1]} : vector<32x128xf32> to vector<32x32xf32>
    %cst_53 = arith.constant 5.000000e-01 : f32
    %134 = vector.broadcast %cst_53 : f32 to vector<32x32xf32>
    %135 = arith.mulf %134, %133 : vector<32x32xf32>
    %136 = math.tanh %135 : vector<32x32xf32>
    %cst_54 = arith.constant 5.000000e-01 : f32
    %137 = vector.broadcast %cst_54 : f32 to vector<32x32xf32>
    %138 = arith.mulf %137, %136 : vector<32x32xf32>
    %cst_55 = arith.constant 5.000000e-01 : f32
    %139 = vector.broadcast %cst_55 : f32 to vector<32x32xf32>
    %140 = arith.addf %138, %139 : vector<32x32xf32>
    %141 = arith.mulf %130, %109 : vector<32x32xf32>
    %142 = arith.mulf %122, %132 : vector<32x32xf32>
    %143 = arith.addf %141, %142 : vector<32x32xf32>
    %144 = math.tanh %143 : vector<32x32xf32>
    %145 = arith.mulf %140, %144 : vector<32x32xf32>
    %c128 = arith.constant 128 : index
    %c0_56 = arith.constant 0 : index
    %146 = vector.load %arg21[%c128, %c0_56] : memref<256x128xf32, #tpu.memory_space<vmem>>, vector<32x128xf32>
    %cst_57 = arith.constant dense<0.000000e+00> : vector<32x128xf32>
    %147 = tpu.matmul %145, %8, %cst_57 {dimension_numbers = #tpu.dot_dimension_numbers<[1], [0], [0], [1], [0, 0, 1, 1], [], []>} : vector<32x32xf32>, vector<32x128xf32>, vector<32x128xf32> -> vector<32x128xf32>
    %148 = arith.addf %146, %147 : vector<32x128xf32>
    %149 = vector.extract_strided_slice %148 {offsets = [0, 0], sizes = [32, 32], strides = [1, 1]} : vector<32x128xf32> to vector<32x32xf32>
    %cst_58 = arith.constant 5.000000e-01 : f32
    %150 = vector.broadcast %cst_58 : f32 to vector<32x32xf32>
    %151 = arith.mulf %150, %149 : vector<32x32xf32>
    %152 = math.tanh %151 : vector<32x32xf32>
    %cst_59 = arith.constant 5.000000e-01 : f32
    %153 = vector.broadcast %cst_59 : f32 to vector<32x32xf32>
    %154 = arith.mulf %153, %152 : vector<32x32xf32>
    %cst_60 = arith.constant 5.000000e-01 : f32
    %155 = vector.broadcast %cst_60 : f32 to vector<32x32xf32>
    %156 = arith.addf %154, %155 : vector<32x32xf32>
    %157 = vector.extract_strided_slice %148 {offsets = [0, 32], sizes = [32, 32], strides = [1, 1]} : vector<32x128xf32> to vector<32x32xf32>
    %cst_61 = arith.constant 5.000000e-01 : f32
    %158 = vector.broadcast %cst_61 : f32 to vector<32x32xf32>
    %159 = arith.mulf %158, %157 : vector<32x32xf32>
    %160 = math.tanh %159 : vector<32x32xf32>
    %cst_62 = arith.constant 5.000000e-01 : f32
    %161 = vector.broadcast %cst_62 : f32 to vector<32x32xf32>
    %162 = arith.mulf %161, %160 : vector<32x32xf32>
    %cst_63 = arith.constant 5.000000e-01 : f32
    %163 = vector.broadcast %cst_63 : f32 to vector<32x32xf32>
    %164 = arith.addf %162, %163 : vector<32x32xf32>
    %165 = vector.extract_strided_slice %148 {offsets = [0, 64], sizes = [32, 32], strides = [1, 1]} : vector<32x128xf32> to vector<32x32xf32>
    %166 = math.tanh %165 : vector<32x32xf32>
    %167 = vector.extract_strided_slice %148 {offsets = [0, 96], sizes = [32, 32], strides = [1, 1]} : vector<32x128xf32> to vector<32x32xf32>
    %cst_64 = arith.constant 5.000000e-01 : f32
    %168 = vector.broadcast %cst_64 : f32 to vector<32x32xf32>
    %169 = arith.mulf %168, %167 : vector<32x32xf32>
    %170 = math.tanh %169 : vector<32x32xf32>
    %cst_65 = arith.constant 5.000000e-01 : f32
    %171 = vector.broadcast %cst_65 : f32 to vector<32x32xf32>
    %172 = arith.mulf %171, %170 : vector<32x32xf32>
    %cst_66 = arith.constant 5.000000e-01 : f32
    %173 = vector.broadcast %cst_66 : f32 to vector<32x32xf32>
    %174 = arith.addf %172, %173 : vector<32x32xf32>
    %175 = arith.mulf %164, %143 : vector<32x32xf32>
    %176 = arith.mulf %156, %166 : vector<32x32xf32>
    %177 = arith.addf %175, %176 : vector<32x32xf32>
    %178 = math.tanh %177 : vector<32x32xf32>
    %179 = arith.mulf %174, %178 : vector<32x32xf32>
    %c160 = arith.constant 160 : index
    %c0_67 = arith.constant 0 : index
    %180 = vector.load %arg21[%c160, %c0_67] : memref<256x128xf32, #tpu.memory_space<vmem>>, vector<32x128xf32>
    %cst_68 = arith.constant dense<0.000000e+00> : vector<32x128xf32>
    %181 = tpu.matmul %179, %8, %cst_68 {dimension_numbers = #tpu.dot_dimension_numbers<[1], [0], [0], [1], [0, 0, 1, 1], [], []>} : vector<32x32xf32>, vector<32x128xf32>, vector<32x128xf32> -> vector<32x128xf32>
    %182 = arith.addf %180, %181 : vector<32x128xf32>
    %183 = vector.extract_strided_slice %182 {offsets = [0, 0], sizes = [32, 32], strides = [1, 1]} : vector<32x128xf32> to vector<32x32xf32>
    %cst_69 = arith.constant 5.000000e-01 : f32
    %184 = vector.broadcast %cst_69 : f32 to vector<32x32xf32>
    %185 = arith.mulf %184, %183 : vector<32x32xf32>
    %186 = math.tanh %185 : vector<32x32xf32>
    %cst_70 = arith.constant 5.000000e-01 : f32
    %187 = vector.broadcast %cst_70 : f32 to vector<32x32xf32>
    %188 = arith.mulf %187, %186 : vector<32x32xf32>
    %cst_71 = arith.constant 5.000000e-01 : f32
    %189 = vector.broadcast %cst_71 : f32 to vector<32x32xf32>
    %190 = arith.addf %188, %189 : vector<32x32xf32>
    %191 = vector.extract_strided_slice %182 {offsets = [0, 32], sizes = [32, 32], strides = [1, 1]} : vector<32x128xf32> to vector<32x32xf32>
    %cst_72 = arith.constant 5.000000e-01 : f32
    %192 = vector.broadcast %cst_72 : f32 to vector<32x32xf32>
    %193 = arith.mulf %192, %191 : vector<32x32xf32>
    %194 = math.tanh %193 : vector<32x32xf32>
    %cst_73 = arith.constant 5.000000e-01 : f32
    %195 = vector.broadcast %cst_73 : f32 to vector<32x32xf32>
    %196 = arith.mulf %195, %194 : vector<32x32xf32>
    %cst_74 = arith.constant 5.000000e-01 : f32
    %197 = vector.broadcast %cst_74 : f32 to vector<32x32xf32>
    %198 = arith.addf %196, %197 : vector<32x32xf32>
    %199 = vector.extract_strided_slice %182 {offsets = [0, 64], sizes = [32, 32], strides = [1, 1]} : vector<32x128xf32> to vector<32x32xf32>
    %200 = math.tanh %199 : vector<32x32xf32>
    %201 = vector.extract_strided_slice %182 {offsets = [0, 96], sizes = [32, 32], strides = [1, 1]} : vector<32x128xf32> to vector<32x32xf32>
    %cst_75 = arith.constant 5.000000e-01 : f32
    %202 = vector.broadcast %cst_75 : f32 to vector<32x32xf32>
    %203 = arith.mulf %202, %201 : vector<32x32xf32>
    %204 = math.tanh %203 : vector<32x32xf32>
    %cst_76 = arith.constant 5.000000e-01 : f32
    %205 = vector.broadcast %cst_76 : f32 to vector<32x32xf32>
    %206 = arith.mulf %205, %204 : vector<32x32xf32>
    %cst_77 = arith.constant 5.000000e-01 : f32
    %207 = vector.broadcast %cst_77 : f32 to vector<32x32xf32>
    %208 = arith.addf %206, %207 : vector<32x32xf32>
    %209 = arith.mulf %198, %177 : vector<32x32xf32>
    %210 = arith.mulf %190, %200 : vector<32x32xf32>
    %211 = arith.addf %209, %210 : vector<32x32xf32>
    %212 = math.tanh %211 : vector<32x32xf32>
    %213 = arith.mulf %208, %212 : vector<32x32xf32>
    %c192 = arith.constant 192 : index
    %c0_78 = arith.constant 0 : index
    %214 = vector.load %arg21[%c192, %c0_78] : memref<256x128xf32, #tpu.memory_space<vmem>>, vector<32x128xf32>
    %cst_79 = arith.constant dense<0.000000e+00> : vector<32x128xf32>
    %215 = tpu.matmul %213, %8, %cst_79 {dimension_numbers = #tpu.dot_dimension_numbers<[1], [0], [0], [1], [0, 0, 1, 1], [], []>} : vector<32x32xf32>, vector<32x128xf32>, vector<32x128xf32> -> vector<32x128xf32>
    %216 = arith.addf %214, %215 : vector<32x128xf32>
    %217 = vector.extract_strided_slice %216 {offsets = [0, 0], sizes = [32, 32], strides = [1, 1]} : vector<32x128xf32> to vector<32x32xf32>
    %cst_80 = arith.constant 5.000000e-01 : f32
    %218 = vector.broadcast %cst_80 : f32 to vector<32x32xf32>
    %219 = arith.mulf %218, %217 : vector<32x32xf32>
    %220 = math.tanh %219 : vector<32x32xf32>
    %cst_81 = arith.constant 5.000000e-01 : f32
    %221 = vector.broadcast %cst_81 : f32 to vector<32x32xf32>
    %222 = arith.mulf %221, %220 : vector<32x32xf32>
    %cst_82 = arith.constant 5.000000e-01 : f32
    %223 = vector.broadcast %cst_82 : f32 to vector<32x32xf32>
    %224 = arith.addf %222, %223 : vector<32x32xf32>
    %225 = vector.extract_strided_slice %216 {offsets = [0, 32], sizes = [32, 32], strides = [1, 1]} : vector<32x128xf32> to vector<32x32xf32>
    %cst_83 = arith.constant 5.000000e-01 : f32
    %226 = vector.broadcast %cst_83 : f32 to vector<32x32xf32>
    %227 = arith.mulf %226, %225 : vector<32x32xf32>
    %228 = math.tanh %227 : vector<32x32xf32>
    %cst_84 = arith.constant 5.000000e-01 : f32
    %229 = vector.broadcast %cst_84 : f32 to vector<32x32xf32>
    %230 = arith.mulf %229, %228 : vector<32x32xf32>
    %cst_85 = arith.constant 5.000000e-01 : f32
    %231 = vector.broadcast %cst_85 : f32 to vector<32x32xf32>
    %232 = arith.addf %230, %231 : vector<32x32xf32>
    %233 = vector.extract_strided_slice %216 {offsets = [0, 64], sizes = [32, 32], strides = [1, 1]} : vector<32x128xf32> to vector<32x32xf32>
    %234 = math.tanh %233 : vector<32x32xf32>
    %235 = vector.extract_strided_slice %216 {offsets = [0, 96], sizes = [32, 32], strides = [1, 1]} : vector<32x128xf32> to vector<32x32xf32>
    %cst_86 = arith.constant 5.000000e-01 : f32
    %236 = vector.broadcast %cst_86 : f32 to vector<32x32xf32>
    %237 = arith.mulf %236, %235 : vector<32x32xf32>
    %238 = math.tanh %237 : vector<32x32xf32>
    %cst_87 = arith.constant 5.000000e-01 : f32
    %239 = vector.broadcast %cst_87 : f32 to vector<32x32xf32>
    %240 = arith.mulf %239, %238 : vector<32x32xf32>
    %cst_88 = arith.constant 5.000000e-01 : f32
    %241 = vector.broadcast %cst_88 : f32 to vector<32x32xf32>
    %242 = arith.addf %240, %241 : vector<32x32xf32>
    %243 = arith.mulf %232, %211 : vector<32x32xf32>
    %244 = arith.mulf %224, %234 : vector<32x32xf32>
    %245 = arith.addf %243, %244 : vector<32x32xf32>
    %246 = math.tanh %245 : vector<32x32xf32>
    %247 = arith.mulf %242, %246 : vector<32x32xf32>
    %c224 = arith.constant 224 : index
    %c0_89 = arith.constant 0 : index
    %248 = vector.load %arg21[%c224, %c0_89] : memref<256x128xf32, #tpu.memory_space<vmem>>, vector<32x128xf32>
    %cst_90 = arith.constant dense<0.000000e+00> : vector<32x128xf32>
    %249 = tpu.matmul %247, %8, %cst_90 {dimension_numbers = #tpu.dot_dimension_numbers<[1], [0], [0], [1], [0, 0, 1, 1], [], []>} : vector<32x32xf32>, vector<32x128xf32>, vector<32x128xf32> -> vector<32x128xf32>
    %250 = arith.addf %248, %249 : vector<32x128xf32>
    %251 = vector.extract_strided_slice %250 {offsets = [0, 0], sizes = [32, 32], strides = [1, 1]} : vector<32x128xf32> to vector<32x32xf32>
    %cst_91 = arith.constant 5.000000e-01 : f32
    %252 = vector.broadcast %cst_91 : f32 to vector<32x32xf32>
    %253 = arith.mulf %252, %251 : vector<32x32xf32>
    %254 = math.tanh %253 : vector<32x32xf32>
    %cst_92 = arith.constant 5.000000e-01 : f32
    %255 = vector.broadcast %cst_92 : f32 to vector<32x32xf32>
    %256 = arith.mulf %255, %254 : vector<32x32xf32>
    %cst_93 = arith.constant 5.000000e-01 : f32
    %257 = vector.broadcast %cst_93 : f32 to vector<32x32xf32>
    %258 = arith.addf %256, %257 : vector<32x32xf32>
    %259 = vector.extract_strided_slice %250 {offsets = [0, 32], sizes = [32, 32], strides = [1, 1]} : vector<32x128xf32> to vector<32x32xf32>
    %cst_94 = arith.constant 5.000000e-01 : f32
    %260 = vector.broadcast %cst_94 : f32 to vector<32x32xf32>
    %261 = arith.mulf %260, %259 : vector<32x32xf32>
    %262 = math.tanh %261 : vector<32x32xf32>
    %cst_95 = arith.constant 5.000000e-01 : f32
    %263 = vector.broadcast %cst_95 : f32 to vector<32x32xf32>
    %264 = arith.mulf %263, %262 : vector<32x32xf32>
    %cst_96 = arith.constant 5.000000e-01 : f32
    %265 = vector.broadcast %cst_96 : f32 to vector<32x32xf32>
    %266 = arith.addf %264, %265 : vector<32x32xf32>
    %267 = vector.extract_strided_slice %250 {offsets = [0, 64], sizes = [32, 32], strides = [1, 1]} : vector<32x128xf32> to vector<32x32xf32>
    %268 = math.tanh %267 : vector<32x32xf32>
    %269 = vector.extract_strided_slice %250 {offsets = [0, 96], sizes = [32, 32], strides = [1, 1]} : vector<32x128xf32> to vector<32x32xf32>
    %cst_97 = arith.constant 5.000000e-01 : f32
    %270 = vector.broadcast %cst_97 : f32 to vector<32x32xf32>
    %271 = arith.mulf %270, %269 : vector<32x32xf32>
    %272 = math.tanh %271 : vector<32x32xf32>
    %cst_98 = arith.constant 5.000000e-01 : f32
    %273 = vector.broadcast %cst_98 : f32 to vector<32x32xf32>
    %274 = arith.mulf %273, %272 : vector<32x32xf32>
    %cst_99 = arith.constant 5.000000e-01 : f32
    %275 = vector.broadcast %cst_99 : f32 to vector<32x32xf32>
    %276 = arith.addf %274, %275 : vector<32x32xf32>
    %277 = arith.mulf %266, %245 : vector<32x32xf32>
    %278 = arith.mulf %258, %268 : vector<32x32xf32>
    %279 = arith.addf %277, %278 : vector<32x32xf32>
    %280 = math.tanh %279 : vector<32x32xf32>
    %281 = arith.mulf %276, %280 : vector<32x32xf32>
    %cst_100 = arith.constant 0.000000e+00 : f32
    %282 = vector.broadcast %cst_100 : f32 to vector<32x32xf32>
    %283 = arith.maximumf %281, %282 : vector<32x32xf32>
    %c0_101 = arith.constant 0 : index
    %c0_102 = arith.constant 0 : index
    %284 = vector.load %arg6[%c0_101, %c0_102] : memref<32x128xf32, #tpu.memory_space<vmem>>, vector<32x128xf32>
    %cst_103 = arith.constant dense<0.000000e+00> : vector<32x128xf32>
    %285 = tpu.matmul %283, %284, %cst_103 {dimension_numbers = #tpu.dot_dimension_numbers<[1], [0], [0], [1], [0, 0, 1, 1], [], []>} : vector<32x32xf32>, vector<32x128xf32>, vector<32x128xf32> -> vector<32x128xf32>
    %c0_104 = arith.constant 0 : index
    %c0_105 = arith.constant 0 : index
    %286 = vector.load %arg7[%c0_104, %c0_105] : memref<1x128xf32, #tpu.memory_space<vmem>>, vector<1x128xf32>
    %287 = vector.broadcast %286 : vector<1x128xf32> to vector<32x128xf32>
    %288 = arith.addf %285, %287 : vector<32x128xf32>
    %c0_106 = arith.constant 0 : index
    %c0_107 = arith.constant 0 : index
    %289 = vector.load %arg8[%c0_106, %c0_107] : memref<128x32xf32, #tpu.memory_space<vmem>>, vector<128x32xf32>
    %cst_108 = arith.constant dense<0.000000e+00> : vector<32x32xf32>
    %290 = tpu.matmul %288, %289, %cst_108 {dimension_numbers = #tpu.dot_dimension_numbers<[1], [0], [0], [1], [0, 0, 1, 1], [], []>} : vector<32x128xf32>, vector<128x32xf32>, vector<32x32xf32> -> vector<32x32xf32>
    %c0_109 = arith.constant 0 : index
    %c0_110 = arith.constant 0 : index
    %291 = vector.load %arg9[%c0_109, %c0_110] : memref<1x32xf32, #tpu.memory_space<vmem>>, vector<1x32xf32>
    %292 = vector.broadcast %291 : vector<1x32xf32> to vector<32x32xf32>
    %293 = arith.addf %290, %292 : vector<32x32xf32>
    %cst_111 = arith.constant 0.000000e+00 : f32
    %294 = vector.broadcast %cst_111 : f32 to vector<32x32xf32>
    %295 = arith.maximumf %293, %294 : vector<32x32xf32>
    %c0_112 = arith.constant 0 : index
    %c0_113 = arith.constant 0 : index
    %296 = vector.load %arg10[%c0_112, %c0_113] : memref<32x1xf32, #tpu.memory_space<vmem>>, vector<32x1xf32>
    %cst_114 = arith.constant dense<0.000000e+00> : vector<32x1xf32>
    %297 = tpu.matmul %295, %296, %cst_114 {dimension_numbers = #tpu.dot_dimension_numbers<[1], [0], [0], [1], [0, 0, 1, 1], [], []>} : vector<32x32xf32>, vector<32x1xf32>, vector<32x1xf32> -> vector<32x1xf32>
    %c0_115 = arith.constant 0 : index
    %c0_116 = arith.constant 0 : index
    %298 = vector.load %arg11[%c0_115, %c0_116] : memref<1x1xf32, #tpu.memory_space<vmem>>, vector<1x1xf32>
    %299 = vector.broadcast %298 : vector<1x1xf32> to vector<32x1xf32>
    %300 = arith.addf %297, %299 : vector<32x1xf32>
    %c0_117 = arith.constant 0 : index
    %c0_118 = arith.constant 0 : index
    %301 = vector.load %arg19[%c0_117, %c0_118] : memref<32x1xf32, #tpu.memory_space<vmem>>, vector<32x1xf32>
    tpu.vector_store %arg19[%c0_117, %c0_118], %300 {strides = array<i32>} : memref<32x1xf32, #tpu.memory_space<vmem>>, vector<32x1xf32>,
    %c0_119 = arith.constant 0 : index
    %c0_120 = arith.constant 0 : index
    %302 = vector.load %arg2[%c0_119, %c0_120] : memref<8x32xf32, #tpu.memory_space<vmem>>, vector<8x32xf32>
    %cst_121 = arith.constant dense<0.000000e+00> : vector<8x32xf32>
    %303 = tpu.matmul %302, %295, %cst_121 {dimension_numbers = #tpu.dot_dimension_numbers<[1], [0], [0], [1], [0, 0, 1, 1], [], []>} : vector<8x32xf32>, vector<32x32xf32>, vector<8x32xf32> -> vector<8x32xf32>
    %c0_122 = arith.constant 0 : index
    %c0_123 = arith.constant 0 : index
    %304 = vector.load %arg1[%c0_122, %c0_123] : memref<48x5xf32, #tpu.memory_space<vmem>>, vector<48x5xf32>
    %c0_124 = arith.constant 0 : index
    %c0_125 = arith.constant 0 : index
    %305 = vector.load %arg12[%c0_124, %c0_125] : memref<5x128xf32, #tpu.memory_space<vmem>>, vector<5x128xf32>
    %cst_126 = arith.constant dense<0.000000e+00> : vector<48x128xf32>
    %306 = tpu.matmul %304, %305, %cst_126 {dimension_numbers = #tpu.dot_dimension_numbers<[1], [0], [0], [1], [0, 0, 1, 1], [], []>} : vector<48x5xf32>, vector<5x128xf32>, vector<48x128xf32> -> vector<48x128xf32>
    %c0_127 = arith.constant 0 : index
    %c0_128 = arith.constant 0 : index
    %307 = vector.load %arg14[%c0_127, %c0_128] : memref<1x128xf32, #tpu.memory_space<vmem>>, vector<1x128xf32>
    %308 = vector.broadcast %307 : vector<1x128xf32> to vector<48x128xf32>
    %309 = arith.addf %306, %308 : vector<48x128xf32>
    %c0_129 = arith.constant 0 : index
    %c0_130 = arith.constant 0 : index
    %310 = vector.load %arg22[%c0_129, %c0_130] : memref<48x128xf32, #tpu.memory_space<vmem>>, vector<48x128xf32>
    tpu.vector_store %arg22[%c0_129, %c0_130], %309 {strides = array<i32>} : memref<48x128xf32, #tpu.memory_space<vmem>>, vector<48x128xf32>,
    %c0_131 = arith.constant 0 : index
    %c0_132 = arith.constant 0 : index
    %311 = vector.load %arg13[%c0_131, %c0_132] : memref<32x128xf32, #tpu.memory_space<vmem>>, vector<32x128xf32>
    %cst_133 = arith.constant 0.000000e+00 : f32
    %312 = vector.broadcast %cst_133 : f32 to vector<8x32xf32>
    %c0_134 = arith.constant 0 : index
    %c0_135 = arith.constant 0 : index
    %313 = vector.load %arg22[%c0_134, %c0_135] : memref<48x128xf32, #tpu.memory_space<vmem>>, vector<8x128xf32>
    %cst_136 = arith.constant dense<0.000000e+00> : vector<8x128xf32>
    %314 = tpu.matmul %303, %311, %cst_136 {dimension_numbers = #tpu.dot_dimension_numbers<[1], [0], [0], [1], [0, 0, 1, 1], [], []>} : vector<8x32xf32>, vector<32x128xf32>, vector<8x128xf32> -> vector<8x128xf32>
    %315 = arith.addf %313, %314 : vector<8x128xf32>
    %316 = vector.extract_strided_slice %315 {offsets = [0, 0], sizes = [8, 32], strides = [1, 1]} : vector<8x128xf32> to vector<8x32xf32>
    %cst_137 = arith.constant 5.000000e-01 : f32
    %317 = vector.broadcast %cst_137 : f32 to vector<8x32xf32>
    %318 = arith.mulf %317, %316 : vector<8x32xf32>
    %319 = math.tanh %318 : vector<8x32xf32>
    %cst_138 = arith.constant 5.000000e-01 : f32
    %320 = vector.broadcast %cst_138 : f32 to vector<8x32xf32>
    %321 = arith.mulf %320, %319 : vector<8x32xf32>
    %cst_139 = arith.constant 5.000000e-01 : f32
    %322 = vector.broadcast %cst_139 : f32 to vector<8x32xf32>
    %323 = arith.addf %321, %322 : vector<8x32xf32>
    %324 = vector.extract_strided_slice %315 {offsets = [0, 32], sizes = [8, 32], strides = [1, 1]} : vector<8x128xf32> to vector<8x32xf32>
    %cst_140 = arith.constant 5.000000e-01 : f32
    %325 = vector.broadcast %cst_140 : f32 to vector<8x32xf32>
    %326 = arith.mulf %325, %324 : vector<8x32xf32>
    %327 = math.tanh %326 : vector<8x32xf32>
    %cst_141 = arith.constant 5.000000e-01 : f32
    %328 = vector.broadcast %cst_141 : f32 to vector<8x32xf32>
    %329 = arith.mulf %328, %327 : vector<8x32xf32>
    %cst_142 = arith.constant 5.000000e-01 : f32
    %330 = vector.broadcast %cst_142 : f32 to vector<8x32xf32>
    %331 = arith.addf %329, %330 : vector<8x32xf32>
    %332 = vector.extract_strided_slice %315 {offsets = [0, 64], sizes = [8, 32], strides = [1, 1]} : vector<8x128xf32> to vector<8x32xf32>
    %333 = math.tanh %332 : vector<8x32xf32>
    %334 = vector.extract_strided_slice %315 {offsets = [0, 96], sizes = [8, 32], strides = [1, 1]} : vector<8x128xf32> to vector<8x32xf32>
    %cst_143 = arith.constant 5.000000e-01 : f32
    %335 = vector.broadcast %cst_143 : f32 to vector<8x32xf32>
    %336 = arith.mulf %335, %334 : vector<8x32xf32>
    %337 = math.tanh %336 : vector<8x32xf32>
    %cst_144 = arith.constant 5.000000e-01 : f32
    %338 = vector.broadcast %cst_144 : f32 to vector<8x32xf32>
    %339 = arith.mulf %338, %337 : vector<8x32xf32>
    %cst_145 = arith.constant 5.000000e-01 : f32
    %340 = vector.broadcast %cst_145 : f32 to vector<8x32xf32>
    %341 = arith.addf %339, %340 : vector<8x32xf32>
    %342 = arith.mulf %331, %312 : vector<8x32xf32>
    %343 = arith.mulf %323, %333 : vector<8x32xf32>
    %344 = arith.addf %342, %343 : vector<8x32xf32>
    %345 = math.tanh %344 : vector<8x32xf32>
    %346 = arith.mulf %341, %345 : vector<8x32xf32>
    %c8 = arith.constant 8 : index
    %c0_146 = arith.constant 0 : index
    %347 = vector.load %arg22[%c8, %c0_146] : memref<48x128xf32, #tpu.memory_space<vmem>>, vector<8x128xf32>
    %cst_147 = arith.constant dense<0.000000e+00> : vector<8x128xf32>
    %348 = tpu.matmul %346, %311, %cst_147 {dimension_numbers = #tpu.dot_dimension_numbers<[1], [0], [0], [1], [0, 0, 1, 1], [], []>} : vector<8x32xf32>, vector<32x128xf32>, vector<8x128xf32> -> vector<8x128xf32>
    %349 = arith.addf %347, %348 : vector<8x128xf32>
    %350 = vector.extract_strided_slice %349 {offsets = [0, 0], sizes = [8, 32], strides = [1, 1]} : vector<8x128xf32> to vector<8x32xf32>
    %cst_148 = arith.constant 5.000000e-01 : f32
    %351 = vector.broadcast %cst_148 : f32 to vector<8x32xf32>
    %352 = arith.mulf %351, %350 : vector<8x32xf32>
    %353 = math.tanh %352 : vector<8x32xf32>
    %cst_149 = arith.constant 5.000000e-01 : f32
    %354 = vector.broadcast %cst_149 : f32 to vector<8x32xf32>
    %355 = arith.mulf %354, %353 : vector<8x32xf32>
    %cst_150 = arith.constant 5.000000e-01 : f32
    %356 = vector.broadcast %cst_150 : f32 to vector<8x32xf32>
    %357 = arith.addf %355, %356 : vector<8x32xf32>
    %358 = vector.extract_strided_slice %349 {offsets = [0, 32], sizes = [8, 32], strides = [1, 1]} : vector<8x128xf32> to vector<8x32xf32>
    %cst_151 = arith.constant 5.000000e-01 : f32
    %359 = vector.broadcast %cst_151 : f32 to vector<8x32xf32>
    %360 = arith.mulf %359, %358 : vector<8x32xf32>
    %361 = math.tanh %360 : vector<8x32xf32>
    %cst_152 = arith.constant 5.000000e-01 : f32
    %362 = vector.broadcast %cst_152 : f32 to vector<8x32xf32>
    %363 = arith.mulf %362, %361 : vector<8x32xf32>
    %cst_153 = arith.constant 5.000000e-01 : f32
    %364 = vector.broadcast %cst_153 : f32 to vector<8x32xf32>
    %365 = arith.addf %363, %364 : vector<8x32xf32>
    %366 = vector.extract_strided_slice %349 {offsets = [0, 64], sizes = [8, 32], strides = [1, 1]} : vector<8x128xf32> to vector<8x32xf32>
    %367 = math.tanh %366 : vector<8x32xf32>
    %368 = vector.extract_strided_slice %349 {offsets = [0, 96], sizes = [8, 32], strides = [1, 1]} : vector<8x128xf32> to vector<8x32xf32>
    %cst_154 = arith.constant 5.000000e-01 : f32
    %369 = vector.broadcast %cst_154 : f32 to vector<8x32xf32>
    %370 = arith.mulf %369, %368 : vector<8x32xf32>
    %371 = math.tanh %370 : vector<8x32xf32>
    %cst_155 = arith.constant 5.000000e-01 : f32
    %372 = vector.broadcast %cst_155 : f32 to vector<8x32xf32>
    %373 = arith.mulf %372, %371 : vector<8x32xf32>
    %cst_156 = arith.constant 5.000000e-01 : f32
    %374 = vector.broadcast %cst_156 : f32 to vector<8x32xf32>
    %375 = arith.addf %373, %374 : vector<8x32xf32>
    %376 = arith.mulf %365, %344 : vector<8x32xf32>
    %377 = arith.mulf %357, %367 : vector<8x32xf32>
    %378 = arith.addf %376, %377 : vector<8x32xf32>
    %379 = math.tanh %378 : vector<8x32xf32>
    %380 = arith.mulf %375, %379 : vector<8x32xf32>
    %c16 = arith.constant 16 : index
    %c0_157 = arith.constant 0 : index
    %381 = vector.load %arg22[%c16, %c0_157] : memref<48x128xf32, #tpu.memory_space<vmem>>, vector<8x128xf32>
    %cst_158 = arith.constant dense<0.000000e+00> : vector<8x128xf32>
    %382 = tpu.matmul %380, %311, %cst_158 {dimension_numbers = #tpu.dot_dimension_numbers<[1], [0], [0], [1], [0, 0, 1, 1], [], []>} : vector<8x32xf32>, vector<32x128xf32>, vector<8x128xf32> -> vector<8x128xf32>
    %383 = arith.addf %381, %382 : vector<8x128xf32>
    %384 = vector.extract_strided_slice %383 {offsets = [0, 0], sizes = [8, 32], strides = [1, 1]} : vector<8x128xf32> to vector<8x32xf32>
    %cst_159 = arith.constant 5.000000e-01 : f32
    %385 = vector.broadcast %cst_159 : f32 to vector<8x32xf32>
    %386 = arith.mulf %385, %384 : vector<8x32xf32>
    %387 = math.tanh %386 : vector<8x32xf32>
    %cst_160 = arith.constant 5.000000e-01 : f32
    %388 = vector.broadcast %cst_160 : f32 to vector<8x32xf32>
    %389 = arith.mulf %388, %387 : vector<8x32xf32>
    %cst_161 = arith.constant 5.000000e-01 : f32
    %390 = vector.broadcast %cst_161 : f32 to vector<8x32xf32>
    %391 = arith.addf %389, %390 : vector<8x32xf32>
    %392 = vector.extract_strided_slice %383 {offsets = [0, 32], sizes = [8, 32], strides = [1, 1]} : vector<8x128xf32> to vector<8x32xf32>
    %cst_162 = arith.constant 5.000000e-01 : f32
    %393 = vector.broadcast %cst_162 : f32 to vector<8x32xf32>
    %394 = arith.mulf %393, %392 : vector<8x32xf32>
    %395 = math.tanh %394 : vector<8x32xf32>
    %cst_163 = arith.constant 5.000000e-01 : f32
    %396 = vector.broadcast %cst_163 : f32 to vector<8x32xf32>
    %397 = arith.mulf %396, %395 : vector<8x32xf32>
    %cst_164 = arith.constant 5.000000e-01 : f32
    %398 = vector.broadcast %cst_164 : f32 to vector<8x32xf32>
    %399 = arith.addf %397, %398 : vector<8x32xf32>
    %400 = vector.extract_strided_slice %383 {offsets = [0, 64], sizes = [8, 32], strides = [1, 1]} : vector<8x128xf32> to vector<8x32xf32>
    %401 = math.tanh %400 : vector<8x32xf32>
    %402 = vector.extract_strided_slice %383 {offsets = [0, 96], sizes = [8, 32], strides = [1, 1]} : vector<8x128xf32> to vector<8x32xf32>
    %cst_165 = arith.constant 5.000000e-01 : f32
    %403 = vector.broadcast %cst_165 : f32 to vector<8x32xf32>
    %404 = arith.mulf %403, %402 : vector<8x32xf32>
    %405 = math.tanh %404 : vector<8x32xf32>
    %cst_166 = arith.constant 5.000000e-01 : f32
    %406 = vector.broadcast %cst_166 : f32 to vector<8x32xf32>
    %407 = arith.mulf %406, %405 : vector<8x32xf32>
    %cst_167 = arith.constant 5.000000e-01 : f32
    %408 = vector.broadcast %cst_167 : f32 to vector<8x32xf32>
    %409 = arith.addf %407, %408 : vector<8x32xf32>
    %410 = arith.mulf %399, %378 : vector<8x32xf32>
    %411 = arith.mulf %391, %401 : vector<8x32xf32>
    %412 = arith.addf %410, %411 : vector<8x32xf32>
    %413 = math.tanh %412 : vector<8x32xf32>
    %414 = arith.mulf %409, %413 : vector<8x32xf32>
    %c24 = arith.constant 24 : index
    %c0_168 = arith.constant 0 : index
    %415 = vector.load %arg22[%c24, %c0_168] : memref<48x128xf32, #tpu.memory_space<vmem>>, vector<8x128xf32>
    %cst_169 = arith.constant dense<0.000000e+00> : vector<8x128xf32>
    %416 = tpu.matmul %414, %311, %cst_169 {dimension_numbers = #tpu.dot_dimension_numbers<[1], [0], [0], [1], [0, 0, 1, 1], [], []>} : vector<8x32xf32>, vector<32x128xf32>, vector<8x128xf32> -> vector<8x128xf32>
    %417 = arith.addf %415, %416 : vector<8x128xf32>
    %418 = vector.extract_strided_slice %417 {offsets = [0, 0], sizes = [8, 32], strides = [1, 1]} : vector<8x128xf32> to vector<8x32xf32>
    %cst_170 = arith.constant 5.000000e-01 : f32
    %419 = vector.broadcast %cst_170 : f32 to vector<8x32xf32>
    %420 = arith.mulf %419, %418 : vector<8x32xf32>
    %421 = math.tanh %420 : vector<8x32xf32>
    %cst_171 = arith.constant 5.000000e-01 : f32
    %422 = vector.broadcast %cst_171 : f32 to vector<8x32xf32>
    %423 = arith.mulf %422, %421 : vector<8x32xf32>
    %cst_172 = arith.constant 5.000000e-01 : f32
    %424 = vector.broadcast %cst_172 : f32 to vector<8x32xf32>
    %425 = arith.addf %423, %424 : vector<8x32xf32>
    %426 = vector.extract_strided_slice %417 {offsets = [0, 32], sizes = [8, 32], strides = [1, 1]} : vector<8x128xf32> to vector<8x32xf32>
    %cst_173 = arith.constant 5.000000e-01 : f32
    %427 = vector.broadcast %cst_173 : f32 to vector<8x32xf32>
    %428 = arith.mulf %427, %426 : vector<8x32xf32>
    %429 = math.tanh %428 : vector<8x32xf32>
    %cst_174 = arith.constant 5.000000e-01 : f32
    %430 = vector.broadcast %cst_174 : f32 to vector<8x32xf32>
    %431 = arith.mulf %430, %429 : vector<8x32xf32>
    %cst_175 = arith.constant 5.000000e-01 : f32
    %432 = vector.broadcast %cst_175 : f32 to vector<8x32xf32>
    %433 = arith.addf %431, %432 : vector<8x32xf32>
    %434 = vector.extract_strided_slice %417 {offsets = [0, 64], sizes = [8, 32], strides = [1, 1]} : vector<8x128xf32> to vector<8x32xf32>
    %435 = math.tanh %434 : vector<8x32xf32>
    %436 = vector.extract_strided_slice %417 {offsets = [0, 96], sizes = [8, 32], strides = [1, 1]} : vector<8x128xf32> to vector<8x32xf32>
    %cst_176 = arith.constant 5.000000e-01 : f32
    %437 = vector.broadcast %cst_176 : f32 to vector<8x32xf32>
    %438 = arith.mulf %437, %436 : vector<8x32xf32>
    %439 = math.tanh %438 : vector<8x32xf32>
    %cst_177 = arith.constant 5.000000e-01 : f32
    %440 = vector.broadcast %cst_177 : f32 to vector<8x32xf32>
    %441 = arith.mulf %440, %439 : vector<8x32xf32>
    %cst_178 = arith.constant 5.000000e-01 : f32
    %442 = vector.broadcast %cst_178 : f32 to vector<8x32xf32>
    %443 = arith.addf %441, %442 : vector<8x32xf32>
    %444 = arith.mulf %433, %412 : vector<8x32xf32>
    %445 = arith.mulf %425, %435 : vector<8x32xf32>
    %446 = arith.addf %444, %445 : vector<8x32xf32>
    %447 = math.tanh %446 : vector<8x32xf32>
    %448 = arith.mulf %443, %447 : vector<8x32xf32>
    %c32_179 = arith.constant 32 : index
    %c0_180 = arith.constant 0 : index
    %449 = vector.load %arg22[%c32_179, %c0_180] : memref<48x128xf32, #tpu.memory_space<vmem>>, vector<8x128xf32>
    %cst_181 = arith.constant dense<0.000000e+00> : vector<8x128xf32>
    %450 = tpu.matmul %448, %311, %cst_181 {dimension_numbers = #tpu.dot_dimension_numbers<[1], [0], [0], [1], [0, 0, 1, 1], [], []>} : vector<8x32xf32>, vector<32x128xf32>, vector<8x128xf32> -> vector<8x128xf32>
    %451 = arith.addf %449, %450 : vector<8x128xf32>
    %452 = vector.extract_strided_slice %451 {offsets = [0, 0], sizes = [8, 32], strides = [1, 1]} : vector<8x128xf32> to vector<8x32xf32>
    %cst_182 = arith.constant 5.000000e-01 : f32
    %453 = vector.broadcast %cst_182 : f32 to vector<8x32xf32>
    %454 = arith.mulf %453, %452 : vector<8x32xf32>
    %455 = math.tanh %454 : vector<8x32xf32>
    %cst_183 = arith.constant 5.000000e-01 : f32
    %456 = vector.broadcast %cst_183 : f32 to vector<8x32xf32>
    %457 = arith.mulf %456, %455 : vector<8x32xf32>
    %cst_184 = arith.constant 5.000000e-01 : f32
    %458 = vector.broadcast %cst_184 : f32 to vector<8x32xf32>
    %459 = arith.addf %457, %458 : vector<8x32xf32>
    %460 = vector.extract_strided_slice %451 {offsets = [0, 32], sizes = [8, 32], strides = [1, 1]} : vector<8x128xf32> to vector<8x32xf32>
    %cst_185 = arith.constant 5.000000e-01 : f32
    %461 = vector.broadcast %cst_185 : f32 to vector<8x32xf32>
    %462 = arith.mulf %461, %460 : vector<8x32xf32>
    %463 = math.tanh %462 : vector<8x32xf32>
    %cst_186 = arith.constant 5.000000e-01 : f32
    %464 = vector.broadcast %cst_186 : f32 to vector<8x32xf32>
    %465 = arith.mulf %464, %463 : vector<8x32xf32>
    %cst_187 = arith.constant 5.000000e-01 : f32
    %466 = vector.broadcast %cst_187 : f32 to vector<8x32xf32>
    %467 = arith.addf %465, %466 : vector<8x32xf32>
    %468 = vector.extract_strided_slice %451 {offsets = [0, 64], sizes = [8, 32], strides = [1, 1]} : vector<8x128xf32> to vector<8x32xf32>
    %469 = math.tanh %468 : vector<8x32xf32>
    %470 = vector.extract_strided_slice %451 {offsets = [0, 96], sizes = [8, 32], strides = [1, 1]} : vector<8x128xf32> to vector<8x32xf32>
    %cst_188 = arith.constant 5.000000e-01 : f32
    %471 = vector.broadcast %cst_188 : f32 to vector<8x32xf32>
    %472 = arith.mulf %471, %470 : vector<8x32xf32>
    %473 = math.tanh %472 : vector<8x32xf32>
    %cst_189 = arith.constant 5.000000e-01 : f32
    %474 = vector.broadcast %cst_189 : f32 to vector<8x32xf32>
    %475 = arith.mulf %474, %473 : vector<8x32xf32>
    %cst_190 = arith.constant 5.000000e-01 : f32
    %476 = vector.broadcast %cst_190 : f32 to vector<8x32xf32>
    %477 = arith.addf %475, %476 : vector<8x32xf32>
    %478 = arith.mulf %467, %446 : vector<8x32xf32>
    %479 = arith.mulf %459, %469 : vector<8x32xf32>
    %480 = arith.addf %478, %479 : vector<8x32xf32>
    %481 = math.tanh %480 : vector<8x32xf32>
    %482 = arith.mulf %477, %481 : vector<8x32xf32>
    %c40 = arith.constant 40 : index
    %c0_191 = arith.constant 0 : index
    %483 = vector.load %arg22[%c40, %c0_191] : memref<48x128xf32, #tpu.memory_space<vmem>>, vector<8x128xf32>
    %cst_192 = arith.constant dense<0.000000e+00> : vector<8x128xf32>
    %484 = tpu.matmul %482, %311, %cst_192 {dimension_numbers = #tpu.dot_dimension_numbers<[1], [0], [0], [1], [0, 0, 1, 1], [], []>} : vector<8x32xf32>, vector<32x128xf32>, vector<8x128xf32> -> vector<8x128xf32>
    %485 = arith.addf %483, %484 : vector<8x128xf32>
    %486 = vector.extract_strided_slice %485 {offsets = [0, 0], sizes = [8, 32], strides = [1, 1]} : vector<8x128xf32> to vector<8x32xf32>
    %cst_193 = arith.constant 5.000000e-01 : f32
    %487 = vector.broadcast %cst_193 : f32 to vector<8x32xf32>
    %488 = arith.mulf %487, %486 : vector<8x32xf32>
    %489 = math.tanh %488 : vector<8x32xf32>
    %cst_194 = arith.constant 5.000000e-01 : f32
    %490 = vector.broadcast %cst_194 : f32 to vector<8x32xf32>
    %491 = arith.mulf %490, %489 : vector<8x32xf32>
    %cst_195 = arith.constant 5.000000e-01 : f32
    %492 = vector.broadcast %cst_195 : f32 to vector<8x32xf32>
    %493 = arith.addf %491, %492 : vector<8x32xf32>
    %494 = vector.extract_strided_slice %485 {offsets = [0, 32], sizes = [8, 32], strides = [1, 1]} : vector<8x128xf32> to vector<8x32xf32>
    %cst_196 = arith.constant 5.000000e-01 : f32
    %495 = vector.broadcast %cst_196 : f32 to vector<8x32xf32>
    %496 = arith.mulf %495, %494 : vector<8x32xf32>
    %497 = math.tanh %496 : vector<8x32xf32>
    %cst_197 = arith.constant 5.000000e-01 : f32
    %498 = vector.broadcast %cst_197 : f32 to vector<8x32xf32>
    %499 = arith.mulf %498, %497 : vector<8x32xf32>
    %cst_198 = arith.constant 5.000000e-01 : f32
    %500 = vector.broadcast %cst_198 : f32 to vector<8x32xf32>
    %501 = arith.addf %499, %500 : vector<8x32xf32>
    %502 = vector.extract_strided_slice %485 {offsets = [0, 64], sizes = [8, 32], strides = [1, 1]} : vector<8x128xf32> to vector<8x32xf32>
    %503 = math.tanh %502 : vector<8x32xf32>
    %504 = vector.extract_strided_slice %485 {offsets = [0, 96], sizes = [8, 32], strides = [1, 1]} : vector<8x128xf32> to vector<8x32xf32>
    %cst_199 = arith.constant 5.000000e-01 : f32
    %505 = vector.broadcast %cst_199 : f32 to vector<8x32xf32>
    %506 = arith.mulf %505, %504 : vector<8x32xf32>
    %507 = math.tanh %506 : vector<8x32xf32>
    %cst_200 = arith.constant 5.000000e-01 : f32
    %508 = vector.broadcast %cst_200 : f32 to vector<8x32xf32>
    %509 = arith.mulf %508, %507 : vector<8x32xf32>
    %cst_201 = arith.constant 5.000000e-01 : f32
    %510 = vector.broadcast %cst_201 : f32 to vector<8x32xf32>
    %511 = arith.addf %509, %510 : vector<8x32xf32>
    %512 = arith.mulf %501, %480 : vector<8x32xf32>
    %513 = arith.mulf %493, %503 : vector<8x32xf32>
    %514 = arith.addf %512, %513 : vector<8x32xf32>
    %515 = math.tanh %514 : vector<8x32xf32>
    %516 = arith.mulf %511, %515 : vector<8x32xf32>
    %cst_202 = arith.constant 0.000000e+00 : f32
    %517 = vector.broadcast %cst_202 : f32 to vector<8x32xf32>
    %518 = arith.maximumf %516, %517 : vector<8x32xf32>
    %c0_203 = arith.constant 0 : index
    %c0_204 = arith.constant 0 : index
    %519 = vector.load %arg15[%c0_203, %c0_204] : memref<32x128xf32, #tpu.memory_space<vmem>>, vector<32x128xf32>
    %cst_205 = arith.constant dense<0.000000e+00> : vector<8x128xf32>
    %520 = tpu.matmul %518, %519, %cst_205 {dimension_numbers = #tpu.dot_dimension_numbers<[1], [0], [0], [1], [0, 0, 1, 1], [], []>} : vector<8x32xf32>, vector<32x128xf32>, vector<8x128xf32> -> vector<8x128xf32>
    %c0_206 = arith.constant 0 : index
    %c0_207 = arith.constant 0 : index
    %521 = vector.load %arg16[%c0_206, %c0_207] : memref<1x128xf32, #tpu.memory_space<vmem>>, vector<1x128xf32>
    %522 = vector.broadcast %521 : vector<1x128xf32> to vector<8x128xf32>
    %523 = arith.addf %520, %522 : vector<8x128xf32>
    %cst_208 = arith.constant 0.000000e+00 : f32
    %524 = vector.broadcast %cst_208 : f32 to vector<8x128xf32>
    %525 = arith.maximumf %523, %524 : vector<8x128xf32>
    %c0_209 = arith.constant 0 : index
    %c0_210 = arith.constant 0 : index
    %526 = vector.load %arg17[%c0_209, %c0_210] : memref<128x1xf32, #tpu.memory_space<vmem>>, vector<128x1xf32>
    %cst_211 = arith.constant dense<0.000000e+00> : vector<8x1xf32>
    %527 = tpu.matmul %525, %526, %cst_211 {dimension_numbers = #tpu.dot_dimension_numbers<[1], [0], [0], [1], [0, 0, 1, 1], [], []>} : vector<8x128xf32>, vector<128x1xf32>, vector<8x1xf32> -> vector<8x1xf32>
    %c0_212 = arith.constant 0 : index
    %c0_213 = arith.constant 0 : index
    %528 = vector.load %arg18[%c0_212, %c0_213] : memref<1x1xf32, #tpu.memory_space<vmem>>, vector<1x1xf32>
    %529 = vector.broadcast %528 : vector<1x1xf32> to vector<8x1xf32>
    %530 = arith.addf %527, %529 : vector<8x1xf32>
    %c0_214 = arith.constant 0 : index
    %c0_215 = arith.constant 0 : index
    %531 = vector.load %arg20[%c0_214, %c0_215] : memref<8x1xf32, #tpu.memory_space<vmem>>, vector<8x1xf32>
    tpu.vector_store %arg20[%c0_214, %c0_215], %530 {strides = array<i32>} : memref<8x1xf32, #tpu.memory_space<vmem>>, vector<8x1xf32>,
    return
  }
}

</mosaic_0001>

<llo_original>
// kernel: netz_forward.1
$region0: #{netz_forward.1}
  #allocation0 [shape = 'u32[]', space=smem, size = 0x4, offset = 0x4, fixed_abs, tag = 'smem constant byte address 0x4 - core index']
  #allocation1 [shape = 'u32[72,128]{1,0:T(1,128)}', space=vmem, size = 0x9000, scoped, tag = 'internal scratch']
  #allocation2 [shape = 'f32[256,128]{1,0:T(8,128)}', space=vmem, size = 0x20000, scoped, tag = 'scratch operand']
  #allocation3 [shape = 'f32[48,128]{1,0:T(8,128)}', space=vmem, size = 0x6000, scoped, tag = 'scratch operand']
  #allocation4 [shape = 'f32[1,1]{1,0:T(1,128)S(1)}', space=vmem, size = 0x200, scoped, tag = 'scoped memory for netz_forward.1']
  #allocation5 [shape = 'f32[1,1]{1,0:T(1,128)S(1)}', space=vmem, size = 0x200, scoped, tag = 'scoped memory for netz_forward.1']
  %s0 = inlined_call_operand.vmem [shape: f32[256,5], index: 0, kind: input, shape index: {}]
  %s1 = inlined_call_operand.vmem [shape: f32[48,5], index: 1, kind: input, shape index: {}]
  %s2 = inlined_call_operand.vmem [shape: f32[8,32], index: 2, kind: input, shape index: {}]
  %s3 = inlined_call_operand.vmem [shape: f32[5,128], index: 3, kind: input, shape index: {}]
  %s4 = inlined_call_operand.vmem [shape: f32[32,128], index: 4, kind: input, shape index: {}]
  %s5 = inlined_call_operand.vmem [shape: f32[1,128], index: 5, kind: input, shape index: {}]
  %s6 = inlined_call_operand.vmem [shape: f32[32,128], index: 6, kind: input, shape index: {}]
  %s7 = inlined_call_operand.vmem [shape: f32[1,128], index: 7, kind: input, shape index: {}]
  %s8 = inlined_call_operand.vmem [shape: f32[128,32], index: 8, kind: input, shape index: {}]
  %s9 = inlined_call_operand.vmem [shape: f32[1,32], index: 9, kind: input, shape index: {}]
  %s10 = inlined_call_operand.vmem [shape: f32[32,1], index: 10, kind: input, shape index: {}]
  %s11 = inlined_call_operand.<no memory space> [shape: f32[1,1], index: 11, kind: input, shape index: {}]
  %s12 = inlined_call_operand.vmem [shape: f32[5,128], index: 12, kind: input, shape index: {}]
  %s13 = inlined_call_operand.vmem [shape: f32[32,128], index: 13, kind: input, shape index: {}]
  %s14 = inlined_call_operand.vmem [shape: f32[1,128], index: 14, kind: input, shape index: {}]
  %s15 = inlined_call_operand.vmem [shape: f32[32,128], index: 15, kind: input, shape index: {}]
  %s16 = inlined_call_operand.vmem [shape: f32[1,128], index: 16, kind: input, shape index: {}]
  %s17 = inlined_call_operand.vmem [shape: f32[128,1], index: 17, kind: input, shape index: {}]
  %s18 = inlined_call_operand.<no memory space> [shape: f32[1,1], index: 18, kind: input, shape index: {}]
  %s19 = inlined_call_operand.vmem [shape: f32[32,1], index: 19, kind: output, shape index: {0}]
  %s20 = inlined_call_operand.vmem [shape: f32[8,1], index: 20, kind: output, shape index: {1}]
  %21 = xla_tuple %s19, %s20
  %s22 = sld [smem:[#allocation0]]
  $region94: #{netz_forward.1} parent=0
    _
  %s24 = ssub.s32 1, %s22
  %s25 = scalar_select 0, %s24, %s22
  %v26 = vstv %s11
  %27 = vst [vmem:[#allocation4] sm:$0x1] %v26
  %v28 = vstv %s18
  %29 = vst [vmem:[#allocation5] sm:$0x1] %v28
  // Predicated region
  $region2: #{netz_forward.1} parent=0 // pred_check
    _
  $region3: #{netz_forward.1} parent=0 // pred_check_branch
    %31 = sbr.rel (0) target = $region5
  $region4: #{netz_forward.1} parent=0 // pred_region
    _
  $region5: #{netz_forward.1} parent=0 // pred_fallthru
    _
  // Predicated region
  $region6: #{netz_forward.1} parent=0 // pred_check
    _
  $region7: #{netz_forward.1} parent=0 // pred_check_branch
    %33 = sbr.rel (0) target = $region9
  $region8: #{netz_forward.1} parent=0 // pred_region
    _
  $region9: #{netz_forward.1} parent=0 // pred_fallthru
    _
  // Predicated region
  $region10: #{netz_forward.1} parent=0 // pred_check
    _
  $region11: #{netz_forward.1} parent=0 // pred_check_branch
    %35 = sbr.rel (0) target = $region13
  $region12: #{netz_forward.1} parent=0 // pred_region
    _
  $region13: #{netz_forward.1} parent=0 // pred_fallthru
    _
  // Predicated region
  $region14: #{netz_forward.1} parent=0 // pred_check
    _
  $region15: #{netz_forward.1} parent=0 // pred_check_branch
    %37 = sbr.rel (0) target = $region17
  $region16: #{netz_forward.1} parent=0 // pred_region
    _
  $region17: #{netz_forward.1} parent=0 // pred_fallthru
    _
  // Predicated region
  $region18: #{netz_forward.1} parent=0 // pred_check
    _
  $region19: #{netz_forward.1} parent=0 // pred_check_branch
    %39 = sbr.rel (0) target = $region21
  $region20: #{netz_forward.1} parent=0 // pred_region
    _
  $region21: #{netz_forward.1} parent=0 // pred_fallthru
    _
  // Predicated region
  $region22: #{netz_forward.1} parent=0 // pred_check
    _
  $region23: #{netz_forward.1} parent=0 // pred_check_branch
    %41 = sbr.rel (0) target = $region25
  $region24: #{netz_forward.1} parent=0 // pred_region
    _
  $region25: #{netz_forward.1} parent=0 // pred_fallthru
    _
  // Predicated region
  $region26: #{netz_forward.1} parent=0 // pred_check
    _
  $region27: #{netz_forward.1} parent=0 // pred_check_branch
    %43 = sbr.rel (0) target = $region29
  $region28: #{netz_forward.1} parent=0 // pred_region
    _
  $region29: #{netz_forward.1} parent=0 // pred_fallthru
    _
  // Predicated region
  $region30: #{netz_forward.1} parent=0 // pred_check
    _
  $region31: #{netz_forward.1} parent=0 // pred_check_branch
    %45 = sbr.rel (0) target = $region33
  $region32: #{netz_forward.1} parent=0 // pred_region
    _
  $region33: #{netz_forward.1} parent=0 // pred_fallthru
    _
  // Predicated region
  $region34: #{netz_forward.1} parent=0 // pred_check
    _
  $region35: #{netz_forward.1} parent=0 // pred_check_branch
    %47 = sbr.rel (0) target = $region37
  $region36: #{netz_forward.1} parent=0 // pred_region
    _
  $region37: #{netz_forward.1} parent=0 // pred_fallthru
    _
  // Predicated region
  $region38: #{netz_forward.1} parent=0 // pred_check
    _
  $region39: #{netz_forward.1} parent=0 // pred_check_branch
    %49 = sbr.rel (0) target = $region41
  $region40: #{netz_forward.1} parent=0 // pred_region
    _
  $region41: #{netz_forward.1} parent=0 // pred_fallthru
    _
  // Predicated region
  $region42: #{netz_forward.1} parent=0 // pred_check
    _
  $region43: #{netz_forward.1} parent=0 // pred_check_branch
    %51 = sbr.rel (0) target = $region45
  $region44: #{netz_forward.1} parent=0 // pred_region
    _
  $region45: #{netz_forward.1} parent=0 // pred_fallthru
    _
  // Predicated region
  $region46: #{netz_forward.1} parent=0 // pred_check
    _
  $region47: #{netz_forward.1} parent=0 // pred_check_branch
    %53 = sbr.rel (0) target = $region49
  $region48: #{netz_forward.1} parent=0 // pred_region
    _
  $region49: #{netz_forward.1} parent=0 // pred_fallthru
    _
  // Predicated region
  $region50: #{netz_forward.1} parent=0 // pred_check
    _
  $region51: #{netz_forward.1} parent=0 // pred_check_branch
    %55 = sbr.rel (0) target = $region53
  $region52: #{netz_forward.1} parent=0 // pred_region
    _
  $region53: #{netz_forward.1} parent=0 // pred_fallthru
    _
  // Predicated region
  $region54: #{netz_forward.1} parent=0 // pred_check
    _
  $region55: #{netz_forward.1} parent=0 // pred_check_branch
    %57 = sbr.rel (0) target = $region57
  $region56: #{netz_forward.1} parent=0 // pred_region
    _
  $region57: #{netz_forward.1} parent=0 // pred_fallthru
    _
  // Predicated region
  $region58: #{netz_forward.1} parent=0 // pred_check
    _
  $region59: #{netz_forward.1} parent=0 // pred_check_branch
    %59 = sbr.rel (0) target = $region61
  $region60: #{netz_forward.1} parent=0 // pred_region
    _
  $region61: #{netz_forward.1} parent=0 // pred_fallthru
    _
  // Predicated region
  $region62: #{netz_forward.1} parent=0 // pred_check
    _
  $region63: #{netz_forward.1} parent=0 // pred_check_branch
    %61 = sbr.rel (0) target = $region65
  $region64: #{netz_forward.1} parent=0 // pred_region
    _
  $region65: #{netz_forward.1} parent=0 // pred_fallthru
    _
  // Predicated region
  $region66: #{netz_forward.1} parent=0 // pred_check
    _
  $region67: #{netz_forward.1} parent=0 // pred_check_branch
    %63 = sbr.rel (0) target = $region69
  $region68: #{netz_forward.1} parent=0 // pred_region
    _
  $region69: #{netz_forward.1} parent=0 // pred_fallthru
    _
  // Predicated region
  $region70: #{netz_forward.1} parent=0 // pred_check
    _
  $region71: #{netz_forward.1} parent=0 // pred_check_branch
    %65 = sbr.rel (0) target = $region73
  $region72: #{netz_forward.1} parent=0 // pred_region
    _
  $region73: #{netz_forward.1} parent=0 // pred_fallthru
    _
  // Predicated region
  $region74: #{netz_forward.1} parent=0 // pred_check
    _
  $region75: #{netz_forward.1} parent=0 // pred_check_branch
    %67 = sbr.rel (0) target = $region77
  $region76: #{netz_forward.1} parent=0 // pred_region
    _
  $region77: #{netz_forward.1} parent=0 // pred_fallthru
    _
  %v68 = vld [vmem:[%s0] sm:$0xff]
  %v69 = vld [vmem:[%s0 + $0x8] sm:$0xff]
  %v70 = vld [vmem:[%s0 + $0x10] sm:$0xff]
  %v71 = vld [vmem:[%s0 + $0x18] sm:$0xff]
  %v72 = vld [vmem:[%s0 + $0x20] sm:$0xff]
  %v73 = vld [vmem:[%s0 + $0x28] sm:$0xff]
  %v74 = vld [vmem:[%s0 + $0x30] sm:$0xff]
  %v75 = vld [vmem:[%s0 + $0x38] sm:$0xff]
  %v76 = vld [vmem:[%s0 + $0x40] sm:$0xff]
  %v77 = vld [vmem:[%s0 + $0x48] sm:$0xff]
  %v78 = vld [vmem:[%s0 + $0x50] sm:$0xff]
  %v79 = vld [vmem:[%s0 + $0x58] sm:$0xff]
  %v80 = vld [vmem:[%s0 + $0x60] sm:$0xff]
  %v81 = vld [vmem:[%s0 + $0x68] sm:$0xff]
  %v82 = vld [vmem:[%s0 + $0x70] sm:$0xff]
  %v83 = vld [vmem:[%s0 + $0x78] sm:$0xff]
  %v84 = vld [vmem:[%s0 + $0x80] sm:$0xff]
  %v85 = vld [vmem:[%s0 + $0x88] sm:$0xff]
  %v86 = vld [vmem:[%s0 + $0x90] sm:$0xff]
  %v87 = vld [vmem:[%s0 + $0x98] sm:$0xff]
  %v88 = vld [vmem:[%s0 + $0xa0] sm:$0xff]
  %v89 = vld [vmem:[%s0 + $0xa8] sm:$0xff]
  %v90 = vld [vmem:[%s0 + $0xb0] sm:$0xff]
  %v91 = vld [vmem:[%s0 + $0xb8] sm:$0xff]
  %v92 = vld [vmem:[%s0 + $0xc0] sm:$0xff]
  %v93 = vld [vmem:[%s0 + $0xc8] sm:$0xff]
  %v94 = vld [vmem:[%s0 + $0xd0] sm:$0xff]
  %v95 = vld [vmem:[%s0 + $0xd8] sm:$0xff]
  %v96 = vld [vmem:[%s0 + $0xe0] sm:$0xff]
  %v97 = vld [vmem:[%s0 + $0xe8] sm:$0xff]
  %v98 = vld [vmem:[%s0 + $0xf0] sm:$0xff]
  %v99 = vld [vmem:[%s0 + $0xf8] sm:$0xff]
  %v100 = vld [vmem:[%s3] sm:$0x1f]
  %v101 = vld [vmem:[%s5] sm:$0x1]
  %v103 = vperm.slane %v101, 0
  %vm105 = vcmask 39936
  %v107 = vsel %vm105, %v68, 0
  %v110 = vsel %vm105, %v69, 0
  %v113 = vsel %vm105, %v70, 0
  %v116 = vsel %vm105, %v71, 0
  %v119 = vsel %vm105, %v72, 0
  %v122 = vsel %vm105, %v73, 0
  %v125 = vsel %vm105, %v74, 0
  %v128 = vsel %vm105, %v75, 0
  %v131 = vsel %vm105, %v76, 0
  %v134 = vsel %vm105, %v77, 0
  %v137 = vsel %vm105, %v78, 0
  %v140 = vsel %vm105, %v79, 0
  %v143 = vsel %vm105, %v80, 0
  %v146 = vsel %vm105, %v81, 0
  %v149 = vsel %vm105, %v82, 0
  %v152 = vsel %vm105, %v83, 0
  %v155 = vsel %vm105, %v84, 0
  %v158 = vsel %vm105, %v85, 0
  %v161 = vsel %vm105, %v86, 0
  %v164 = vsel %vm105, %v87, 0
  %v167 = vsel %vm105, %v88, 0
  %v170 = vsel %vm105, %v89, 0
  %v173 = vsel %vm105, %v90, 0
  %v176 = vsel %vm105, %v91, 0
  %v179 = vsel %vm105, %v92, 0
  %v182 = vsel %vm105, %v93, 0
  %v185 = vsel %vm105, %v94, 0
  %v188 = vsel %vm105, %v95, 0
  %v191 = vsel %vm105, %v96, 0
  %v194 = vsel %vm105, %v97, 0
  %v197 = vsel %vm105, %v98, 0
  %v200 = vsel %vm105, %v99, 0
  %vm202 = vcmask 1044480
  %v204 = vsel %vm202, %v100, 0
  %206 = vmatpush.msra.mxu0 0.0
  %207 = vmatpush.msra.mxu0 0.0
  %208 = vmatpush.msra.mxu0 0.0
  %209 = vmatpush.msra.mxu0 0.0
  %210 = vmatpush.msra.mxu0 0.0
  %211 = vmatpush.msra.mxu0 0.0
  %212 = vmatpush.msra.mxu0 0.0
  %213 = vmatpush.msra.mxu0 0.0
  %214 = vmatpush.msra.mxu0 0.0
  %215 = vmatpush.msra.mxu0 0.0
  %216 = vmatpush.msra.mxu0 0.0
  %217 = vmatpush.msra.mxu0 0.0
  %218 = vmatpush.msra.mxu0 0.0
  %219 = vmatpush.msra.mxu0 0.0
  %220 = vmatpush.msra.mxu0 0.0
  %221 = vmatpush.msra.mxu0 %v204
  %222 = vmatmul.f32.gmra.mxu0 %v107
  %v223 = vpop.f32.mrf.mxu0
  %v224 = vadd.f32 %v103, %v223
  %225 = vmatmul.f32.gmra.mxu0 %v110
  %v226 = vpop.f32.mrf.mxu0
  %v227 = vadd.f32 %v103, %v226
  %228 = vmatmul.f32.gmra.mxu0 %v113
  %v229 = vpop.f32.mrf.mxu0
  %v230 = vadd.f32 %v103, %v229
  %231 = vmatmul.f32.gmra.mxu0 %v116
  %v232 = vpop.f32.mrf.mxu0
  %v233 = vadd.f32 %v103, %v232
  %234 = vmatmul.f32.gmra.mxu0 %v119
  %v235 = vpop.f32.mrf.mxu0
  %v236 = vadd.f32 %v103, %v235
  %237 = vmatmul.f32.gmra.mxu0 %v122
  %v238 = vpop.f32.mrf.mxu0
  %v239 = vadd.f32 %v103, %v238
  %240 = vmatmul.f32.gmra.mxu0 %v125
  %v241 = vpop.f32.mrf.mxu0
  %v242 = vadd.f32 %v103, %v241
  %243 = vmatmul.f32.gmra.mxu0 %v128
  %v244 = vpop.f32.mrf.mxu0
  %v245 = vadd.f32 %v103, %v244
  %246 = vmatmul.f32.gmra.mxu0 %v131
  %v247 = vpop.f32.mrf.mxu0
  %v248 = vadd.f32 %v103, %v247
  %249 = vmatmul.f32.gmra.mxu0 %v134
  %v250 = vpop.f32.mrf.mxu0
  %v251 = vadd.f32 %v103, %v250
  %252 = vmatmul.f32.gmra.mxu0 %v137
  %v253 = vpop.f32.mrf.mxu0
  %v254 = vadd.f32 %v103, %v253
  %255 = vmatmul.f32.gmra.mxu0 %v140
  %v256 = vpop.f32.mrf.mxu0
  %v257 = vadd.f32 %v103, %v256
  %258 = vmatmul.f32.gmra.mxu0 %v143
  %v259 = vpop.f32.mrf.mxu0
  %v260 = vadd.f32 %v103, %v259
  %261 = vmatmul.f32.gmra.mxu0 %v146
  %v262 = vpop.f32.mrf.mxu0
  %v263 = vadd.f32 %v103, %v262
  %264 = vmatmul.f32.gmra.mxu0 %v149
  %v265 = vpop.f32.mrf.mxu0
  %v266 = vadd.f32 %v103, %v265
  %267 = vmatmul.f32.gmra.mxu0 %v152
  %v268 = vpop.f32.mrf.mxu0
  %v269 = vadd.f32 %v103, %v268
  %270 = vmatmul.f32.gmra.mxu0 %v155
  %v271 = vpop.f32.mrf.mxu0
  %v272 = vadd.f32 %v103, %v271
  %273 = vmatmul.f32.gmra.mxu0 %v158
  %v274 = vpop.f32.mrf.mxu0
  %v275 = vadd.f32 %v103, %v274
  %276 = vmatmul.f32.gmra.mxu0 %v161
  %v277 = vpop.f32.mrf.mxu0
  %v278 = vadd.f32 %v103, %v277
  %279 = vmatmul.f32.gmra.mxu0 %v164
  %v280 = vpop.f32.mrf.mxu0
  %v281 = vadd.f32 %v103, %v280
  %282 = vmatmul.f32.gmra.mxu0 %v167
  %v283 = vpop.f32.mrf.mxu0
  %v284 = vadd.f32 %v103, %v283
  %285 = vmatmul.f32.gmra.mxu0 %v170
  %v286 = vpop.f32.mrf.mxu0
  %v287 = vadd.f32 %v103, %v286
  %288 = vmatmul.f32.gmra.mxu0 %v173
  %v289 = vpop.f32.mrf.mxu0
  %v290 = vadd.f32 %v103, %v289
  %291 = vmatmul.f32.gmra.mxu0 %v176
  %v292 = vpop.f32.mrf.mxu0
  %v293 = vadd.f32 %v103, %v292
  %294 = vmatmul.f32.gmra.mxu0 %v179
  %v295 = vpop.f32.mrf.mxu0
  %v296 = vadd.f32 %v103, %v295
  %297 = vmatmul.f32.gmra.mxu0 %v182
  %v298 = vpop.f32.mrf.mxu0
  %v299 = vadd.f32 %v103, %v298
  %300 = vmatmul.f32.gmra.mxu0 %v185
  %v301 = vpop.f32.mrf.mxu0
  %v302 = vadd.f32 %v103, %v301
  %303 = vmatmul.f32.gmra.mxu0 %v188
  %v304 = vpop.f32.mrf.mxu0
  %v305 = vadd.f32 %v103, %v304
  %306 = vmatmul.f32.gmra.mxu0 %v191
  %v307 = vpop.f32.mrf.mxu0
  %v308 = vadd.f32 %v103, %v307
  %309 = vmatmul.f32.gmra.mxu0 %v194
  %v310 = vpop.f32.mrf.mxu0
  %v311 = vadd.f32 %v103, %v310
  %312 = vmatmul.f32.gmra.mxu0 %v197
  %v313 = vpop.f32.mrf.mxu0
  %v314 = vadd.f32 %v103, %v313
  %315 = vmatmul.f32.gmra.mxu0 %v200
  %v316 = vpop.f32.mrf.mxu0
  %v317 = vadd.f32 %v103, %v316
  %318 = vdwg.mxu0
  %319 = vst [vmem:[#allocation2] sm:$0xff] %v224
  %320 = vst [vmem:[#allocation2 + $0x8] sm:$0xff] %v227
  %321 = vst [vmem:[#allocation2 + $0x10] sm:$0xff] %v230
  %322 = vst [vmem:[#allocation2 + $0x18] sm:$0xff] %v233
  %323 = vst [vmem:[#allocation2 + $0x20] sm:$0xff] %v236
  %324 = vst [vmem:[#allocation2 + $0x28] sm:$0xff] %v239
  %325 = vst [vmem:[#allocation2 + $0x30] sm:$0xff] %v242
  %326 = vst [vmem:[#allocation2 + $0x38] sm:$0xff] %v245
  %327 = vst [vmem:[#allocation2 + $0x40] sm:$0xff] %v248
  %328 = vst [vmem:[#allocation2 + $0x48] sm:$0xff] %v251
  %329 = vst [vmem:[#allocation2 + $0x50] sm:$0xff] %v254
  %330 = vst [vmem:[#allocation2 + $0x58] sm:$0xff] %v257
  %331 = vst [vmem:[#allocation2 + $0x60] sm:$0xff] %v260
  %332 = vst [vmem:[#allocation2 + $0x68] sm:$0xff] %v263
  %333 = vst [vmem:[#allocation2 + $0x70] sm:$0xff] %v266
  %334 = vst [vmem:[#allocation2 + $0x78] sm:$0xff] %v269
  %335 = vst [vmem:[#allocation2 + $0x80] sm:$0xff] %v272
  %336 = vst [vmem:[#allocation2 + $0x88] sm:$0xff] %v275
  %337 = vst [vmem:[#allocation2 + $0x90] sm:$0xff] %v278
  %338 = vst [vmem:[#allocation2 + $0x98] sm:$0xff] %v281
  %339 = vst [vmem:[#allocation2 + $0xa0] sm:$0xff] %v284
  %340 = vst [vmem:[#allocation2 + $0xa8] sm:$0xff] %v287
  %341 = vst [vmem:[#allocation2 + $0xb0] sm:$0xff] %v290
  %342 = vst [vmem:[#allocation2 + $0xb8] sm:$0xff] %v293
  %343 = vst [vmem:[#allocation2 + $0xc0] sm:$0xff] %v296
  %344 = vst [vmem:[#allocation2 + $0xc8] sm:$0xff] %v299
  %345 = vst [vmem:[#allocation2 + $0xd0] sm:$0xff] %v302
  %346 = vst [vmem:[#allocation2 + $0xd8] sm:$0xff] %v305
  %347 = vst [vmem:[#allocation2 + $0xe0] sm:$0xff] %v308
  %348 = vst [vmem:[#allocation2 + $0xe8] sm:$0xff] %v311
  %349 = vst [vmem:[#allocation2 + $0xf0] sm:$0xff] %v314
  %350 = vst [vmem:[#allocation2 + $0xf8] sm:$0xff] %v317
  %v351 = vld [vmem:[%s4] sm:$0xff]
  %v352 = vld [vmem:[%s4 + $0x8] sm:$0xff]
  %v353 = vld [vmem:[%s4 + $0x10] sm:$0xff]
  %v354 = vld [vmem:[%s4 + $0x18] sm:$0xff]
  %v355 = vld [vmem:[#allocation2] sm:$0xff]
  %v356 = vld [vmem:[#allocation2 + $0x8] sm:$0xff]
  %v357 = vld [vmem:[#allocation2 + $0x10] sm:$0xff]
  %v358 = vld [vmem:[#allocation2 + $0x18] sm:$0xff]
  %vm359 = vcmask 261120
  %v361 = vsel %vm359, 0.0, 0
  %363 = vmatpush.msra.mxu0 0.0
  %364 = vmatpush.msra.mxu0 0.0
  %365 = vmatpush.msra.mxu0 0.0
  %366 = vmatpush.msra.mxu0 0.0
  %367 = vmatpush.msra.mxu0 0.0
  %368 = vmatpush.msra.mxu0 0.0
  %369 = vmatpush.msra.mxu0 0.0
  %370 = vmatpush.msra.mxu0 0.0
  %371 = vmatpush.msra.mxu0 0.0
  %372 = vmatpush.msra.mxu0 0.0
  %373 = vmatpush.msra.mxu0 0.0
  %374 = vmatpush.msra.mxu0 0.0
  %375 = vmatpush.msra.mxu0 %v354
  %376 = vmatpush.msra.mxu0 %v353
  %377 = vmatpush.msra.mxu0 %v352
  %378 = vmatpush.msra.mxu0 %v351
  %379 = vmatmul.f32.gmra.mxu0 %v361
  %v380 = vpop.f32.mrf.mxu0
  %v381 = vadd.f32 0.0, %v380
  %382 = vmatmul.f32.gmra.mxu0 %v361
  %v383 = vpop.f32.mrf.mxu0
  %v384 = vadd.f32 0.0, %v383
  %385 = vmatmul.f32.gmra.mxu0 %v361
  %v386 = vpop.f32.mrf.mxu0
  %v387 = vadd.f32 0.0, %v386
  %388 = vmatmul.f32.gmra.mxu0 %v361
  %v389 = vpop.f32.mrf.mxu0
  %v390 = vadd.f32 0.0, %v389
  %391 = vdwg.mxu0
  %v392 = vadd.f32 %v355, %v381
  %v393 = vadd.f32 %v356, %v384
  %v394 = vadd.f32 %v357, %v387
  %v395 = vadd.f32 %v358, %v390
  %v396 = vmul.f32 %v392, 0.5
  %v397 = vmul.f32 %v393, 0.5
  %v398 = vmul.f32 %v394, 0.5
  %v399 = vmul.f32 %v395, 0.5
  %v400 = vtanh.pop %v396
  %v401 = vtanh.pop %v397
  %v402 = vtanh.pop %v398
  %v403 = vtanh.pop %v399
  %v404 = vmul.f32 %v400, 0.5
  %v405 = vmul.f32 %v401, 0.5
  %v406 = vmul.f32 %v402, 0.5
  %v407 = vmul.f32 %v403, 0.5
  %v408 = vadd.f32 %v404, 0.5
  %v409 = vadd.f32 %v405, 0.5
  %v410 = vadd.f32 %v406, 0.5
  %v411 = vadd.f32 %v407, 0.5
  %v412 = vtanh.pop %v392
  %v413 = vtanh.pop %v393
  %v414 = vtanh.pop %v394
  %v415 = vtanh.pop %v395
  %v416 = vmul.f32 %v408, 0.0
  %v417 = vmul.f32 %v409, 0.0
  %v418 = vmul.f32 %v410, 0.0
  %v419 = vmul.f32 %v411, 0.0
  %424 = vrot.lane.b32.xlu0 %v412, 64
  %v425 = vpop.permute.xlu0 %424
  %426 = vrot.lane.b32.xlu0 %v413, 64
  %v427 = vpop.permute.xlu0 %426
  %428 = vrot.lane.b32.xlu0 %v414, 64
  %v429 = vpop.permute.xlu0 %428
  %430 = vrot.lane.b32.xlu0 %v415, 64
  %v431 = vpop.permute.xlu0 %430
  %v436 = vmul.f32 %v408, %v425
  %v437 = vmul.f32 %v409, %v427
  %v438 = vmul.f32 %v410, %v429
  %v439 = vmul.f32 %v411, %v431
  %444 = vrot.lane.b32.xlu0 %v436, 32
  %v445 = vpop.permute.xlu0 %444
  %446 = vrot.lane.b32.xlu0 %v437, 32
  %v447 = vpop.permute.xlu0 %446
  %448 = vrot.lane.b32.xlu0 %v438, 32
  %v449 = vpop.permute.xlu0 %448
  %450 = vrot.lane.b32.xlu0 %v439, 32
  %v451 = vpop.permute.xlu0 %450
  %v456 = vadd.f32 %v416, %v445
  %v457 = vadd.f32 %v417, %v447
  %v458 = vadd.f32 %v418, %v449
  %v459 = vadd.f32 %v419, %v451
  %v460 = vtanh.pop %v456
  %v461 = vtanh.pop %v457
  %v462 = vtanh.pop %v458
  %v463 = vtanh.pop %v459
  %468 = vrot.lane.b32.xlu0 %v460, 64
  %v469 = vpop.permute.xlu0 %468
  %470 = vrot.lane.b32.xlu0 %v461, 64
  %v471 = vpop.permute.xlu0 %470
  %472 = vrot.lane.b32.xlu0 %v462, 64
  %v473 = vpop.permute.xlu0 %472
  %474 = vrot.lane.b32.xlu0 %v463, 64
  %v475 = vpop.permute.xlu0 %474
  %v480 = vmul.f32 %v408, %v469
  %v481 = vmul.f32 %v409, %v471
  %v482 = vmul.f32 %v410, %v473
  %v483 = vmul.f32 %v411, %v475
  %v484 = vld [vmem:[#allocation2 + $0x20] sm:$0xff]
  %v485 = vld [vmem:[#allocation2 + $0x28] sm:$0xff]
  %v486 = vld [vmem:[#allocation2 + $0x30] sm:$0xff]
  %v487 = vld [vmem:[#allocation2 + $0x38] sm:$0xff]
  %492 = vrot.lane.b32.xlu0 %v480, 32
  %v493 = vpop.permute.xlu0 %492
  %494 = vrot.lane.b32.xlu0 %v481, 32
  %v495 = vpop.permute.xlu0 %494
  %496 = vrot.lane.b32.xlu0 %v482, 32
  %v497 = vpop.permute.xlu0 %496
  %498 = vrot.lane.b32.xlu0 %v483, 32
  %v499 = vpop.permute.xlu0 %498
  %v500 = vsel %vm359, %v493, 0
  %v502 = vsel %vm359, %v495, 0
  %v504 = vsel %vm359, %v497, 0
  %v506 = vsel %vm359, %v499, 0
  %508 = vmatpush.msra.mxu0 0.0
  %509 = vmatpush.msra.mxu0 0.0
  %510 = vmatpush.msra.mxu0 0.0
  %511 = vmatpush.msra.mxu0 0.0
  %512 = vmatpush.msra.mxu0 0.0
  %513 = vmatpush.msra.mxu0 0.0
  %514 = vmatpush.msra.mxu0 0.0
  %515 = vmatpush.msra.mxu0 0.0
  %516 = vmatpush.msra.mxu0 0.0
  %517 = vmatpush.msra.mxu0 0.0
  %518 = vmatpush.msra.mxu0 0.0
  %519 = vmatpush.msra.mxu0 0.0
  %520 = vmatpush.msra.mxu0 %v354
  %521 = vmatpush.msra.mxu0 %v353
  %522 = vmatpush.msra.mxu0 %v352
  %523 = vmatpush.msra.mxu0 %v351
  %524 = vmatmul.f32.gmra.mxu0 %v500
  %v525 = vpop.f32.mrf.mxu0
  %v526 = vadd.f32 0.0, %v525
  %527 = vmatmul.f32.gmra.mxu0 %v502
  %v528 = vpop.f32.mrf.mxu0
  %v529 = vadd.f32 0.0, %v528
  %530 = vmatmul.f32.gmra.mxu0 %v504
  %v531 = vpop.f32.mrf.mxu0
  %v532 = vadd.f32 0.0, %v531
  %533 = vmatmul.f32.gmra.mxu0 %v506
  %v534 = vpop.f32.mrf.mxu0
  %v535 = vadd.f32 0.0, %v534
  %536 = vdwg.mxu0
  %v537 = vadd.f32 %v484, %v526
  %v538 = vadd.f32 %v485, %v529
  %v539 = vadd.f32 %v486, %v532
  %v540 = vadd.f32 %v487, %v535
  %v541 = vmul.f32 %v537, 0.5
  %v542 = vmul.f32 %v538, 0.5
  %v543 = vmul.f32 %v539, 0.5
  %v544 = vmul.f32 %v540, 0.5
  %v545 = vtanh.pop %v541
  %v546 = vtanh.pop %v542
  %v547 = vtanh.pop %v543
  %v548 = vtanh.pop %v544
  %v549 = vmul.f32 %v545, 0.5
  %v550 = vmul.f32 %v546, 0.5
  %v551 = vmul.f32 %v547, 0.5
  %v552 = vmul.f32 %v548, 0.5
  %v553 = vadd.f32 %v549, 0.5
  %v554 = vadd.f32 %v550, 0.5
  %v555 = vadd.f32 %v551, 0.5
  %v556 = vadd.f32 %v552, 0.5
  %v557 = vtanh.pop %v537
  %v558 = vtanh.pop %v538
  %v559 = vtanh.pop %v539
  %v560 = vtanh.pop %v540
  %v561 = vmul.f32 %v553, %v456
  %v562 = vmul.f32 %v554, %v457
  %v563 = vmul.f32 %v555, %v458
  %v564 = vmul.f32 %v556, %v459
  %569 = vrot.lane.b32.xlu0 %v557, 64
  %v570 = vpop.permute.xlu0 %569
  %571 = vrot.lane.b32.xlu0 %v558, 64
  %v572 = vpop.permute.xlu0 %571
  %573 = vrot.lane.b32.xlu0 %v559, 64
  %v574 = vpop.permute.xlu0 %573
  %575 = vrot.lane.b32.xlu0 %v560, 64
  %v576 = vpop.permute.xlu0 %575
  %v581 = vmul.f32 %v553, %v570
  %v582 = vmul.f32 %v554, %v572
  %v583 = vmul.f32 %v555, %v574
  %v584 = vmul.f32 %v556, %v576
  %589 = vrot.lane.b32.xlu0 %v581, 32
  %v590 = vpop.permute.xlu0 %589
  %591 = vrot.lane.b32.xlu0 %v582, 32
  %v592 = vpop.permute.xlu0 %591
  %593 = vrot.lane.b32.xlu0 %v583, 32
  %v594 = vpop.permute.xlu0 %593
  %595 = vrot.lane.b32.xlu0 %v584, 32
  %v596 = vpop.permute.xlu0 %595
  %v601 = vadd.f32 %v561, %v590
  %v602 = vadd.f32 %v562, %v592
  %v603 = vadd.f32 %v563, %v594
  %v604 = vadd.f32 %v564, %v596
  %v605 = vtanh.pop %v601
  %v606 = vtanh.pop %v602
  %v607 = vtanh.pop %v603
  %v608 = vtanh.pop %v604
  %613 = vrot.lane.b32.xlu0 %v605, 64
  %v614 = vpop.permute.xlu0 %613
  %615 = vrot.lane.b32.xlu0 %v606, 64
  %v616 = vpop.permute.xlu0 %615
  %617 = vrot.lane.b32.xlu0 %v607, 64
  %v618 = vpop.permute.xlu0 %617
  %619 = vrot.lane.b32.xlu0 %v608, 64
  %v620 = vpop.permute.xlu0 %619
  %v625 = vmul.f32 %v553, %v614
  %v626 = vmul.f32 %v554, %v616
  %v627 = vmul.f32 %v555, %v618
  %v628 = vmul.f32 %v556, %v620
  %v629 = vld [vmem:[#allocation2 + $0x40] sm:$0xff]
  %v630 = vld [vmem:[#allocation2 + $0x48] sm:$0xff]
  %v631 = vld [vmem:[#allocation2 + $0x50] sm:$0xff]
  %v632 = vld [vmem:[#allocation2 + $0x58] sm:$0xff]
  %637 = vrot.lane.b32.xlu0 %v625, 32
  %v638 = vpop.permute.xlu0 %637
  %639 = vrot.lane.b32.xlu0 %v626, 32
  %v640 = vpop.permute.xlu0 %639
  %641 = vrot.lane.b32.xlu0 %v627, 32
  %v642 = vpop.permute.xlu0 %641
  %643 = vrot.lane.b32.xlu0 %v628, 32
  %v644 = vpop.permute.xlu0 %643
  %v645 = vsel %vm359, %v638, 0
  %v647 = vsel %vm359, %v640, 0
  %v649 = vsel %vm359, %v642, 0
  %v651 = vsel %vm359, %v644, 0
  %653 = vmatpush.msra.mxu0 0.0
  %654 = vmatpush.msra.mxu0 0.0
  %655 = vmatpush.msra.mxu0 0.0
  %656 = vmatpush.msra.mxu0 0.0
  %657 = vmatpush.msra.mxu0 0.0
  %658 = vmatpush.msra.mxu0 0.0
  %659 = vmatpush.msra.mxu0 0.0
  %660 = vmatpush.msra.mxu0 0.0
  %661 = vmatpush.msra.mxu0 0.0
  %662 = vmatpush.msra.mxu0 0.0
  %663 = vmatpush.msra.mxu0 0.0
  %664 = vmatpush.msra.mxu0 0.0
  %665 = vmatpush.msra.mxu0 %v354
  %666 = vmatpush.msra.mxu0 %v353
  %667 = vmatpush.msra.mxu0 %v352
  %668 = vmatpush.msra.mxu0 %v351
  %669 = vmatmul.f32.gmra.mxu0 %v645
  %v670 = vpop.f32.mrf.mxu0
  %v671 = vadd.f32 0.0, %v670
  %672 = vmatmul.f32.gmra.mxu0 %v647
  %v673 = vpop.f32.mrf.mxu0
  %v674 = vadd.f32 0.0, %v673
  %675 = vmatmul.f32.gmra.mxu0 %v649
  %v676 = vpop.f32.mrf.mxu0
  %v677 = vadd.f32 0.0, %v676
  %678 = vmatmul.f32.gmra.mxu0 %v651
  %v679 = vpop.f32.mrf.mxu0
  %v680 = vadd.f32 0.0, %v679
  %681 = vdwg.mxu0
  %v682 = vadd.f32 %v629, %v671
  %v683 = vadd.f32 %v630, %v674
  %v684 = vadd.f32 %v631, %v677
  %v685 = vadd.f32 %v632, %v680
  %v686 = vmul.f32 %v682, 0.5
  %v687 = vmul.f32 %v683, 0.5
  %v688 = vmul.f32 %v684, 0.5
  %v689 = vmul.f32 %v685, 0.5
  %v690 = vtanh.pop %v686
  %v691 = vtanh.pop %v687
  %v692 = vtanh.pop %v688
  %v693 = vtanh.pop %v689
  %v694 = vmul.f32 %v690, 0.5
  %v695 = vmul.f32 %v691, 0.5
  %v696 = vmul.f32 %v692, 0.5
  %v697 = vmul.f32 %v693, 0.5
  %v698 = vadd.f32 %v694, 0.5
  %v699 = vadd.f32 %v695, 0.5
  %v700 = vadd.f32 %v696, 0.5
  %v701 = vadd.f32 %v697, 0.5
  %v702 = vtanh.pop %v682
  %v703 = vtanh.pop %v683
  %v704 = vtanh.pop %v684
  %v705 = vtanh.pop %v685
  %v706 = vmul.f32 %v698, %v601
  %v707 = vmul.f32 %v699, %v602
  %v708 = vmul.f32 %v700, %v603
  %v709 = vmul.f32 %v701, %v604
  %714 = vrot.lane.b32.xlu0 %v702, 64
  %v715 = vpop.permute.xlu0 %714
  %716 = vrot.lane.b32.xlu0 %v703, 64
  %v717 = vpop.permute.xlu0 %716
  %718 = vrot.lane.b32.xlu0 %v704, 64
  %v719 = vpop.permute.xlu0 %718
  %720 = vrot.lane.b32.xlu0 %v705, 64
  %v721 = vpop.permute.xlu0 %720
  %v726 = vmul.f32 %v698, %v715
  %v727 = vmul.f32 %v699, %v717
  %v728 = vmul.f32 %v700, %v719
  %v729 = vmul.f32 %v701, %v721
  %734 = vrot.lane.b32.xlu0 %v726, 32
  %v735 = vpop.permute.xlu0 %734
  %736 = vrot.lane.b32.xlu0 %v727, 32
  %v737 = vpop.permute.xlu0 %736
  %738 = vrot.lane.b32.xlu0 %v728, 32
  %v739 = vpop.permute.xlu0 %738
  %740 = vrot.lane.b32.xlu0 %v729, 32
  %v741 = vpop.permute.xlu0 %740
  %v746 = vadd.f32 %v706, %v735
  %v747 = vadd.f32 %v707, %v737
  %v748 = vadd.f32 %v708, %v739
  %v749 = vadd.f32 %v709, %v741
  %v750 = vtanh.pop %v746
  %v751 = vtanh.pop %v747
  %v752 = vtanh.pop %v748
  %v753 = vtanh.pop %v749
  %758 = vrot.lane.b32.xlu0 %v750, 64
  %v759 = vpop.permute.xlu0 %758
  %760 = vrot.lane.b32.xlu0 %v751, 64
  %v761 = vpop.permute.xlu0 %760
  %762 = vrot.lane.b32.xlu0 %v752, 64
  %v763 = vpop.permute.xlu0 %762
  %764 = vrot.lane.b32.xlu0 %v753, 64
  %v765 = vpop.permute.xlu0 %764
  %v770 = vmul.f32 %v698, %v759
  %v771 = vmul.f32 %v699, %v761
  %v772 = vmul.f32 %v700, %v763
  %v773 = vmul.f32 %v701, %v765
  %v774 = vld [vmem:[#allocation2 + $0x60] sm:$0xff]
  %v775 = vld [vmem:[#allocation2 + $0x68] sm:$0xff]
  %v776 = vld [vmem:[#allocation2 + $0x70] sm:$0xff]
  %v777 = vld [vmem:[#allocation2 + $0x78] sm:$0xff]
  %782 = vrot.lane.b32.xlu0 %v770, 32
  %v783 = vpop.permute.xlu0 %782
  %784 = vrot.lane.b32.xlu0 %v771, 32
  %v785 = vpop.permute.xlu0 %784
  %786 = vrot.lane.b32.xlu0 %v772, 32
  %v787 = vpop.permute.xlu0 %786
  %788 = vrot.lane.b32.xlu0 %v773, 32
  %v789 = vpop.permute.xlu0 %788
  %v790 = vsel %vm359, %v783, 0
  %v792 = vsel %vm359, %v785, 0
  %v794 = vsel %vm359, %v787, 0
  %v796 = vsel %vm359, %v789, 0
  %798 = vmatpush.msra.mxu0 0.0
  %799 = vmatpush.msra.mxu0 0.0
  %800 = vmatpush.msra.mxu0 0.0
  %801 = vmatpush.msra.mxu0 0.0
  %802 = vmatpush.msra.mxu0 0.0
  %803 = vmatpush.msra.mxu0 0.0
  %804 = vmatpush.msra.mxu0 0.0
  %805 = vmatpush.msra.mxu0 0.0
  %806 = vmatpush.msra.mxu0 0.0
  %807 = vmatpush.msra.mxu0 0.0
  %808 = vmatpush.msra.mxu0 0.0
  %809 = vmatpush.msra.mxu0 0.0
  %810 = vmatpush.msra.mxu0 %v354
  %811 = vmatpush.msra.mxu0 %v353
  %812 = vmatpush.msra.mxu0 %v352
  %813 = vmatpush.msra.mxu0 %v351
  %814 = vmatmul.f32.gmra.mxu0 %v790
  %v815 = vpop.f32.mrf.mxu0
  %v816 = vadd.f32 0.0, %v815
  %817 = vmatmul.f32.gmra.mxu0 %v792
  %v818 = vpop.f32.mrf.mxu0
  %v819 = vadd.f32 0.0, %v818
  %820 = vmatmul.f32.gmra.mxu0 %v794
  %v821 = vpop.f32.mrf.mxu0
  %v822 = vadd.f32 0.0, %v821
  %823 = vmatmul.f32.gmra.mxu0 %v796
  %v824 = vpop.f32.mrf.mxu0
  %v825 = vadd.f32 0.0, %v824
  %826 = vdwg.mxu0
  %v827 = vadd.f32 %v774, %v816
  %v828 = vadd.f32 %v775, %v819
  %v829 = vadd.f32 %v776, %v822
  %v830 = vadd.f32 %v777, %v825
  %v831 = vmul.f32 %v827, 0.5
  %v832 = vmul.f32 %v828, 0.5
  %v833 = vmul.f32 %v829, 0.5
  %v834 = vmul.f32 %v830, 0.5
  %v835 = vtanh.pop %v831
  %v836 = vtanh.pop %v832
  %v837 = vtanh.pop %v833
  %v838 = vtanh.pop %v834
  %v839 = vmul.f32 %v835, 0.5
  %v840 = vmul.f32 %v836, 0.5
  %v841 = vmul.f32 %v837, 0.5
  %v842 = vmul.f32 %v838, 0.5
  %v843 = vadd.f32 %v839, 0.5
  %v844 = vadd.f32 %v840, 0.5
  %v845 = vadd.f32 %v841, 0.5
  %v846 = vadd.f32 %v842, 0.5
  %v847 = vtanh.pop %v827
  %v848 = vtanh.pop %v828
  %v849 = vtanh.pop %v829
  %v850 = vtanh.pop %v830
  %v851 = vmul.f32 %v843, %v746
  %v852 = vmul.f32 %v844, %v747
  %v853 = vmul.f32 %v845, %v748
  %v854 = vmul.f32 %v846, %v749
  %859 = vrot.lane.b32.xlu0 %v847, 64
  %v860 = vpop.permute.xlu0 %859
  %861 = vrot.lane.b32.xlu0 %v848, 64
  %v862 = vpop.permute.xlu0 %861
  %863 = vrot.lane.b32.xlu0 %v849, 64
  %v864 = vpop.permute.xlu0 %863
  %865 = vrot.lane.b32.xlu0 %v850, 64
  %v866 = vpop.permute.xlu0 %865
  %v871 = vmul.f32 %v843, %v860
  %v872 = vmul.f32 %v844, %v862
  %v873 = vmul.f32 %v845, %v864
  %v874 = vmul.f32 %v846, %v866
  %879 = vrot.lane.b32.xlu0 %v871, 32
  %v880 = vpop.permute.xlu0 %879
  %881 = vrot.lane.b32.xlu0 %v872, 32
  %v882 = vpop.permute.xlu0 %881
  %883 = vrot.lane.b32.xlu0 %v873, 32
  %v884 = vpop.permute.xlu0 %883
  %885 = vrot.lane.b32.xlu0 %v874, 32
  %v886 = vpop.permute.xlu0 %885
  %v891 = vadd.f32 %v851, %v880
  %v892 = vadd.f32 %v852, %v882
  %v893 = vadd.f32 %v853, %v884
  %v894 = vadd.f32 %v854, %v886
  %v895 = vtanh.pop %v891
  %v896 = vtanh.pop %v892
  %v897 = vtanh.pop %v893
  %v898 = vtanh.pop %v894
  %903 = vrot.lane.b32.xlu0 %v895, 64
  %v904 = vpop.permute.xlu0 %903
  %905 = vrot.lane.b32.xlu0 %v896, 64
  %v906 = vpop.permute.xlu0 %905
  %907 = vrot.lane.b32.xlu0 %v897, 64
  %v908 = vpop.permute.xlu0 %907
  %909 = vrot.lane.b32.xlu0 %v898, 64
  %v910 = vpop.permute.xlu0 %909
  %v915 = vmul.f32 %v843, %v904
  %v916 = vmul.f32 %v844, %v906
  %v917 = vmul.f32 %v845, %v908
  %v918 = vmul.f32 %v846, %v910
  %v919 = vld [vmem:[#allocation2 + $0x80] sm:$0xff]
  %v920 = vld [vmem:[#allocation2 + $0x88] sm:$0xff]
  %v921 = vld [vmem:[#allocation2 + $0x90] sm:$0xff]
  %v922 = vld [vmem:[#allocation2 + $0x98] sm:$0xff]
  %927 = vrot.lane.b32.xlu0 %v915, 32
  %v928 = vpop.permute.xlu0 %927
  %929 = vrot.lane.b32.xlu0 %v916, 32
  %v930 = vpop.permute.xlu0 %929
  %931 = vrot.lane.b32.xlu0 %v917, 32
  %v932 = vpop.permute.xlu0 %931
  %933 = vrot.lane.b32.xlu0 %v918, 32
  %v934 = vpop.permute.xlu0 %933
  %v935 = vsel %vm359, %v928, 0
  %v937 = vsel %vm359, %v930, 0
  %v939 = vsel %vm359, %v932, 0
  %v941 = vsel %vm359, %v934, 0
  %943 = vmatpush.msra.mxu0 0.0
  %944 = vmatpush.msra.mxu0 0.0
  %945 = vmatpush.msra.mxu0 0.0
  %946 = vmatpush.msra.mxu0 0.0
  %947 = vmatpush.msra.mxu0 0.0
  %948 = vmatpush.msra.mxu0 0.0
  %949 = vmatpush.msra.mxu0 0.0
  %950 = vmatpush.msra.mxu0 0.0
  %951 = vmatpush.msra.mxu0 0.0
  %952 = vmatpush.msra.mxu0 0.0
  %953 = vmatpush.msra.mxu0 0.0
  %954 = vmatpush.msra.mxu0 0.0
  %955 = vmatpush.msra.mxu0 %v354
  %956 = vmatpush.msra.mxu0 %v353
  %957 = vmatpush.msra.mxu0 %v352
  %958 = vmatpush.msra.mxu0 %v351
  %959 = vmatmul.f32.gmra.mxu0 %v935
  %v960 = vpop.f32.mrf.mxu0
  %v961 = vadd.f32 0.0, %v960
  %962 = vmatmul.f32.gmra.mxu0 %v937
  %v963 = vpop.f32.mrf.mxu0
  %v964 = vadd.f32 0.0, %v963
  %965 = vmatmul.f32.gmra.mxu0 %v939
  %v966 = vpop.f32.mrf.mxu0
  %v967 = vadd.f32 0.0, %v966
  %968 = vmatmul.f32.gmra.mxu0 %v941
  %v969 = vpop.f32.mrf.mxu0
  %v970 = vadd.f32 0.0, %v969
  %971 = vdwg.mxu0
  %v972 = vadd.f32 %v919, %v961
  %v973 = vadd.f32 %v920, %v964
  %v974 = vadd.f32 %v921, %v967
  %v975 = vadd.f32 %v922, %v970
  %v976 = vmul.f32 %v972, 0.5
  %v977 = vmul.f32 %v973, 0.5
  %v978 = vmul.f32 %v974, 0.5
  %v979 = vmul.f32 %v975, 0.5
  %v980 = vtanh.pop %v976
  %v981 = vtanh.pop %v977
  %v982 = vtanh.pop %v978
  %v983 = vtanh.pop %v979
  %v984 = vmul.f32 %v980, 0.5
  %v985 = vmul.f32 %v981, 0.5
  %v986 = vmul.f32 %v982, 0.5
  %v987 = vmul.f32 %v983, 0.5
  %v988 = vadd.f32 %v984, 0.5
  %v989 = vadd.f32 %v985, 0.5
  %v990 = vadd.f32 %v986, 0.5
  %v991 = vadd.f32 %v987, 0.5
  %v992 = vtanh.pop %v972
  %v993 = vtanh.pop %v973
  %v994 = vtanh.pop %v974
  %v995 = vtanh.pop %v975
  %v996 = vmul.f32 %v988, %v891
  %v997 = vmul.f32 %v989, %v892
  %v998 = vmul.f32 %v990, %v893
  %v999 = vmul.f32 %v991, %v894
  %1004 = vrot.lane.b32.xlu0 %v992, 64
  %v1005 = vpop.permute.xlu0 %1004
  %1006 = vrot.lane.b32.xlu0 %v993, 64
  %v1007 = vpop.permute.xlu0 %1006
  %1008 = vrot.lane.b32.xlu0 %v994, 64
  %v1009 = vpop.permute.xlu0 %1008
  %1010 = vrot.lane.b32.xlu0 %v995, 64
  %v1011 = vpop.permute.xlu0 %1010
  %v1016 = vmul.f32 %v988, %v1005
  %v1017 = vmul.f32 %v989, %v1007
  %v1018 = vmul.f32 %v990, %v1009
  %v1019 = vmul.f32 %v991, %v1011
  %1024 = vrot.lane.b32.xlu0 %v1016, 32
  %v1025 = vpop.permute.xlu0 %1024
  %1026 = vrot.lane.b32.xlu0 %v1017, 32
  %v1027 = vpop.permute.xlu0 %1026
  %1028 = vrot.lane.b32.xlu0 %v1018, 32
  %v1029 = vpop.permute.xlu0 %1028
  %1030 = vrot.lane.b32.xlu0 %v1019, 32
  %v1031 = vpop.permute.xlu0 %1030
  %v1036 = vadd.f32 %v996, %v1025
  %v1037 = vadd.f32 %v997, %v1027
  %v1038 = vadd.f32 %v998, %v1029
  %v1039 = vadd.f32 %v999, %v1031
  %v1040 = vtanh.pop %v1036
  %v1041 = vtanh.pop %v1037
  %v1042 = vtanh.pop %v1038
  %v1043 = vtanh.pop %v1039
  %1048 = vrot.lane.b32.xlu0 %v1040, 64
  %v1049 = vpop.permute.xlu0 %1048
  %1050 = vrot.lane.b32.xlu0 %v1041, 64
  %v1051 = vpop.permute.xlu0 %1050
  %1052 = vrot.lane.b32.xlu0 %v1042, 64
  %v1053 = vpop.permute.xlu0 %1052
  %1054 = vrot.lane.b32.xlu0 %v1043, 64
  %v1055 = vpop.permute.xlu0 %1054
  %v1060 = vmul.f32 %v988, %v1049
  %v1061 = vmul.f32 %v989, %v1051
  %v1062 = vmul.f32 %v990, %v1053
  %v1063 = vmul.f32 %v991, %v1055
  %v1064 = vld [vmem:[#allocation2 + $0xa0] sm:$0xff]
  %v1065 = vld [vmem:[#allocation2 + $0xa8] sm:$0xff]
  %v1066 = vld [vmem:[#allocation2 + $0xb0] sm:$0xff]
  %v1067 = vld [vmem:[#allocation2 + $0xb8] sm:$0xff]
  %1072 = vrot.lane.b32.xlu0 %v1060, 32
  %v1073 = vpop.permute.xlu0 %1072
  %1074 = vrot.lane.b32.xlu0 %v1061, 32
  %v1075 = vpop.permute.xlu0 %1074
  %1076 = vrot.lane.b32.xlu0 %v1062, 32
  %v1077 = vpop.permute.xlu0 %1076
  %1078 = vrot.lane.b32.xlu0 %v1063, 32
  %v1079 = vpop.permute.xlu0 %1078
  %v1080 = vsel %vm359, %v1073, 0
  %v1082 = vsel %vm359, %v1075, 0
  %v1084 = vsel %vm359, %v1077, 0
  %v1086 = vsel %vm359, %v1079, 0
  %1088 = vmatpush.msra.mxu0 0.0
  %1089 = vmatpush.msra.mxu0 0.0
  %1090 = vmatpush.msra.mxu0 0.0
  %1091 = vmatpush.msra.mxu0 0.0
  %1092 = vmatpush.msra.mxu0 0.0
  %1093 = vmatpush.msra.mxu0 0.0
  %1094 = vmatpush.msra.mxu0 0.0
  %1095 = vmatpush.msra.mxu0 0.0
  %1096 = vmatpush.msra.mxu0 0.0
  %1097 = vmatpush.msra.mxu0 0.0
  %1098 = vmatpush.msra.mxu0 0.0
  %1099 = vmatpush.msra.mxu0 0.0
  %1100 = vmatpush.msra.mxu0 %v354
  %1101 = vmatpush.msra.mxu0 %v353
  %1102 = vmatpush.msra.mxu0 %v352
  %1103 = vmatpush.msra.mxu0 %v351
  %1104 = vmatmul.f32.gmra.mxu0 %v1080
  %v1105 = vpop.f32.mrf.mxu0
  %v1106 = vadd.f32 0.0, %v1105
  %1107 = vmatmul.f32.gmra.mxu0 %v1082
  %v1108 = vpop.f32.mrf.mxu0
  %v1109 = vadd.f32 0.0, %v1108
  %1110 = vmatmul.f32.gmra.mxu0 %v1084
  %v1111 = vpop.f32.mrf.mxu0
  %v1112 = vadd.f32 0.0, %v1111
  %1113 = vmatmul.f32.gmra.mxu0 %v1086
  %v1114 = vpop.f32.mrf.mxu0
  %v1115 = vadd.f32 0.0, %v1114
  %1116 = vdwg.mxu0
  %v1117 = vadd.f32 %v1064, %v1106
  %v1118 = vadd.f32 %v1065, %v1109
  %v1119 = vadd.f32 %v1066, %v1112
  %v1120 = vadd.f32 %v1067, %v1115
  %v1121 = vmul.f32 %v1117, 0.5
  %v1122 = vmul.f32 %v1118, 0.5
  %v1123 = vmul.f32 %v1119, 0.5
  %v1124 = vmul.f32 %v1120, 0.5
  %v1125 = vtanh.pop %v1121
  %v1126 = vtanh.pop %v1122
  %v1127 = vtanh.pop %v1123
  %v1128 = vtanh.pop %v1124
  %v1129 = vmul.f32 %v1125, 0.5
  %v1130 = vmul.f32 %v1126, 0.5
  %v1131 = vmul.f32 %v1127, 0.5
  %v1132 = vmul.f32 %v1128, 0.5
  %v1133 = vadd.f32 %v1129, 0.5
  %v1134 = vadd.f32 %v1130, 0.5
  %v1135 = vadd.f32 %v1131, 0.5
  %v1136 = vadd.f32 %v1132, 0.5
  %v1137 = vtanh.pop %v1117
  %v1138 = vtanh.pop %v1118
  %v1139 = vtanh.pop %v1119
  %v1140 = vtanh.pop %v1120
  %v1141 = vmul.f32 %v1133, %v1036
  %v1142 = vmul.f32 %v1134, %v1037
  %v1143 = vmul.f32 %v1135, %v1038
  %v1144 = vmul.f32 %v1136, %v1039
  %1149 = vrot.lane.b32.xlu0 %v1137, 64
  %v1150 = vpop.permute.xlu0 %1149
  %1151 = vrot.lane.b32.xlu0 %v1138, 64
  %v1152 = vpop.permute.xlu0 %1151
  %1153 = vrot.lane.b32.xlu0 %v1139, 64
  %v1154 = vpop.permute.xlu0 %1153
  %1155 = vrot.lane.b32.xlu0 %v1140, 64
  %v1156 = vpop.permute.xlu0 %1155
  %v1161 = vmul.f32 %v1133, %v1150
  %v1162 = vmul.f32 %v1134, %v1152
  %v1163 = vmul.f32 %v1135, %v1154
  %v1164 = vmul.f32 %v1136, %v1156
  %1169 = vrot.lane.b32.xlu0 %v1161, 32
  %v1170 = vpop.permute.xlu0 %1169
  %1171 = vrot.lane.b32.xlu0 %v1162, 32
  %v1172 = vpop.permute.xlu0 %1171
  %1173 = vrot.lane.b32.xlu0 %v1163, 32
  %v1174 = vpop.permute.xlu0 %1173
  %1175 = vrot.lane.b32.xlu0 %v1164, 32
  %v1176 = vpop.permute.xlu0 %1175
  %v1181 = vadd.f32 %v1141, %v1170
  %v1182 = vadd.f32 %v1142, %v1172
  %v1183 = vadd.f32 %v1143, %v1174
  %v1184 = vadd.f32 %v1144, %v1176
  %v1185 = vtanh.pop %v1181
  %v1186 = vtanh.pop %v1182
  %v1187 = vtanh.pop %v1183
  %v1188 = vtanh.pop %v1184
  %1193 = vrot.lane.b32.xlu0 %v1185, 64
  %v1194 = vpop.permute.xlu0 %1193
  %1195 = vrot.lane.b32.xlu0 %v1186, 64
  %v1196 = vpop.permute.xlu0 %1195
  %1197 = vrot.lane.b32.xlu0 %v1187, 64
  %v1198 = vpop.permute.xlu0 %1197
  %1199 = vrot.lane.b32.xlu0 %v1188, 64
  %v1200 = vpop.permute.xlu0 %1199
  %v1205 = vmul.f32 %v1133, %v1194
  %v1206 = vmul.f32 %v1134, %v1196
  %v1207 = vmul.f32 %v1135, %v1198
  %v1208 = vmul.f32 %v1136, %v1200
  %v1209 = vld [vmem:[#allocation2 + $0xc0] sm:$0xff]
  %v1210 = vld [vmem:[#allocation2 + $0xc8] sm:$0xff]
  %v1211 = vld [vmem:[#allocation2 + $0xd0] sm:$0xff]
  %v1212 = vld [vmem:[#allocation2 + $0xd8] sm:$0xff]
  %1217 = vrot.lane.b32.xlu0 %v1205, 32
  %v1218 = vpop.permute.xlu0 %1217
  %1219 = vrot.lane.b32.xlu0 %v1206, 32
  %v1220 = vpop.permute.xlu0 %1219
  %1221 = vrot.lane.b32.xlu0 %v1207, 32
  %v1222 = vpop.permute.xlu0 %1221
  %1223 = vrot.lane.b32.xlu0 %v1208, 32
  %v1224 = vpop.permute.xlu0 %1223
  %v1225 = vsel %vm359, %v1218, 0
  %v1227 = vsel %vm359, %v1220, 0
  %v1229 = vsel %vm359, %v1222, 0
  %v1231 = vsel %vm359, %v1224, 0
  %1233 = vmatpush.msra.mxu0 0.0
  %1234 = vmatpush.msra.mxu0 0.0
  %1235 = vmatpush.msra.mxu0 0.0
  %1236 = vmatpush.msra.mxu0 0.0
  %1237 = vmatpush.msra.mxu0 0.0
  %1238 = vmatpush.msra.mxu0 0.0
  %1239 = vmatpush.msra.mxu0 0.0
  %1240 = vmatpush.msra.mxu0 0.0
  %1241 = vmatpush.msra.mxu0 0.0
  %1242 = vmatpush.msra.mxu0 0.0
  %1243 = vmatpush.msra.mxu0 0.0
  %1244 = vmatpush.msra.mxu0 0.0
  %1245 = vmatpush.msra.mxu0 %v354
  %1246 = vmatpush.msra.mxu0 %v353
  %1247 = vmatpush.msra.mxu0 %v352
  %1248 = vmatpush.msra.mxu0 %v351
  %1249 = vmatmul.f32.gmra.mxu0 %v1225
  %v1250 = vpop.f32.mrf.mxu0
  %v1251 = vadd.f32 0.0, %v1250
  %1252 = vmatmul.f32.gmra.mxu0 %v1227
  %v1253 = vpop.f32.mrf.mxu0
  %v1254 = vadd.f32 0.0, %v1253
  %1255 = vmatmul.f32.gmra.mxu0 %v1229
  %v1256 = vpop.f32.mrf.mxu0
  %v1257 = vadd.f32 0.0, %v1256
  %1258 = vmatmul.f32.gmra.mxu0 %v1231
  %v1259 = vpop.f32.mrf.mxu0
  %v1260 = vadd.f32 0.0, %v1259
  %1261 = vdwg.mxu0
  %v1262 = vadd.f32 %v1209, %v1251
  %v1263 = vadd.f32 %v1210, %v1254
  %v1264 = vadd.f32 %v1211, %v1257
  %v1265 = vadd.f32 %v1212, %v1260
  %v1266 = vmul.f32 %v1262, 0.5
  %v1267 = vmul.f32 %v1263, 0.5
  %v1268 = vmul.f32 %v1264, 0.5
  %v1269 = vmul.f32 %v1265, 0.5
  %v1270 = vtanh.pop %v1266
  %v1271 = vtanh.pop %v1267
  %v1272 = vtanh.pop %v1268
  %v1273 = vtanh.pop %v1269
  %v1274 = vmul.f32 %v1270, 0.5
  %v1275 = vmul.f32 %v1271, 0.5
  %v1276 = vmul.f32 %v1272, 0.5
  %v1277 = vmul.f32 %v1273, 0.5
  %v1278 = vadd.f32 %v1274, 0.5
  %v1279 = vadd.f32 %v1275, 0.5
  %v1280 = vadd.f32 %v1276, 0.5
  %v1281 = vadd.f32 %v1277, 0.5
  %v1282 = vtanh.pop %v1262
  %v1283 = vtanh.pop %v1263
  %v1284 = vtanh.pop %v1264
  %v1285 = vtanh.pop %v1265
  %v1286 = vmul.f32 %v1278, %v1181
  %v1287 = vmul.f32 %v1279, %v1182
  %v1288 = vmul.f32 %v1280, %v1183
  %v1289 = vmul.f32 %v1281, %v1184
  %1294 = vrot.lane.b32.xlu0 %v1282, 64
  %v1295 = vpop.permute.xlu0 %1294
  %1296 = vrot.lane.b32.xlu0 %v1283, 64
  %v1297 = vpop.permute.xlu0 %1296
  %1298 = vrot.lane.b32.xlu0 %v1284, 64
  %v1299 = vpop.permute.xlu0 %1298
  %1300 = vrot.lane.b32.xlu0 %v1285, 64
  %v1301 = vpop.permute.xlu0 %1300
  %v1306 = vmul.f32 %v1278, %v1295
  %v1307 = vmul.f32 %v1279, %v1297
  %v1308 = vmul.f32 %v1280, %v1299
  %v1309 = vmul.f32 %v1281, %v1301
  %1314 = vrot.lane.b32.xlu0 %v1306, 32
  %v1315 = vpop.permute.xlu0 %1314
  %1316 = vrot.lane.b32.xlu0 %v1307, 32
  %v1317 = vpop.permute.xlu0 %1316
  %1318 = vrot.lane.b32.xlu0 %v1308, 32
  %v1319 = vpop.permute.xlu0 %1318
  %1320 = vrot.lane.b32.xlu0 %v1309, 32
  %v1321 = vpop.permute.xlu0 %1320
  %v1326 = vadd.f32 %v1286, %v1315
  %v1327 = vadd.f32 %v1287, %v1317
  %v1328 = vadd.f32 %v1288, %v1319
  %v1329 = vadd.f32 %v1289, %v1321
  %v1330 = vtanh.pop %v1326
  %v1331 = vtanh.pop %v1327
  %v1332 = vtanh.pop %v1328
  %v1333 = vtanh.pop %v1329
  %1338 = vrot.lane.b32.xlu0 %v1330, 64
  %v1339 = vpop.permute.xlu0 %1338
  %1340 = vrot.lane.b32.xlu0 %v1331, 64
  %v1341 = vpop.permute.xlu0 %1340
  %1342 = vrot.lane.b32.xlu0 %v1332, 64
  %v1343 = vpop.permute.xlu0 %1342
  %1344 = vrot.lane.b32.xlu0 %v1333, 64
  %v1345 = vpop.permute.xlu0 %1344
  %v1350 = vmul.f32 %v1278, %v1339
  %v1351 = vmul.f32 %v1279, %v1341
  %v1352 = vmul.f32 %v1280, %v1343
  %v1353 = vmul.f32 %v1281, %v1345
  %v1354 = vld [vmem:[#allocation2 + $0xe0] sm:$0xff]
  %v1355 = vld [vmem:[#allocation2 + $0xe8] sm:$0xff]
  %v1356 = vld [vmem:[#allocation2 + $0xf0] sm:$0xff]
  %v1357 = vld [vmem:[#allocation2 + $0xf8] sm:$0xff]
  %1362 = vrot.lane.b32.xlu0 %v1350, 32
  %v1363 = vpop.permute.xlu0 %1362
  %1364 = vrot.lane.b32.xlu0 %v1351, 32
  %v1365 = vpop.permute.xlu0 %1364
  %1366 = vrot.lane.b32.xlu0 %v1352, 32
  %v1367 = vpop.permute.xlu0 %1366
  %1368 = vrot.lane.b32.xlu0 %v1353, 32
  %v1369 = vpop.permute.xlu0 %1368
  %v1370 = vsel %vm359, %v1363, 0
  %v1372 = vsel %vm359, %v1365, 0
  %v1374 = vsel %vm359, %v1367, 0
  %v1376 = vsel %vm359, %v1369, 0
  %1378 = vmatpush.msra.mxu0 0.0
  %1379 = vmatpush.msra.mxu0 0.0
  %1380 = vmatpush.msra.mxu0 0.0
  %1381 = vmatpush.msra.mxu0 0.0
  %1382 = vmatpush.msra.mxu0 0.0
  %1383 = vmatpush.msra.mxu0 0.0
  %1384 = vmatpush.msra.mxu0 0.0
  %1385 = vmatpush.msra.mxu0 0.0
  %1386 = vmatpush.msra.mxu0 0.0
  %1387 = vmatpush.msra.mxu0 0.0
  %1388 = vmatpush.msra.mxu0 0.0
  %1389 = vmatpush.msra.mxu0 0.0
  %1390 = vmatpush.msra.mxu0 %v354
  %1391 = vmatpush.msra.mxu0 %v353
  %1392 = vmatpush.msra.mxu0 %v352
  %1393 = vmatpush.msra.mxu0 %v351
  %1394 = vmatmul.f32.gmra.mxu0 %v1370
  %v1395 = vpop.f32.mrf.mxu0
  %v1396 = vadd.f32 0.0, %v1395
  %1397 = vmatmul.f32.gmra.mxu0 %v1372
  %v1398 = vpop.f32.mrf.mxu0
  %v1399 = vadd.f32 0.0, %v1398
  %1400 = vmatmul.f32.gmra.mxu0 %v1374
  %v1401 = vpop.f32.mrf.mxu0
  %v1402 = vadd.f32 0.0, %v1401
  %1403 = vmatmul.f32.gmra.mxu0 %v1376
  %v1404 = vpop.f32.mrf.mxu0
  %v1405 = vadd.f32 0.0, %v1404
  %1406 = vdwg.mxu0
  %v1407 = vadd.f32 %v1354, %v1396
  %v1408 = vadd.f32 %v1355, %v1399
  %v1409 = vadd.f32 %v1356, %v1402
  %v1410 = vadd.f32 %v1357, %v1405
  %v1411 = vmul.f32 %v1407, 0.5
  %v1412 = vmul.f32 %v1408, 0.5
  %v1413 = vmul.f32 %v1409, 0.5
  %v1414 = vmul.f32 %v1410, 0.5
  %v1415 = vtanh.pop %v1411
  %v1416 = vtanh.pop %v1412
  %v1417 = vtanh.pop %v1413
  %v1418 = vtanh.pop %v1414
  %v1419 = vmul.f32 %v1415, 0.5
  %v1420 = vmul.f32 %v1416, 0.5
  %v1421 = vmul.f32 %v1417, 0.5
  %v1422 = vmul.f32 %v1418, 0.5
  %v1423 = vadd.f32 %v1419, 0.5
  %v1424 = vadd.f32 %v1420, 0.5
  %v1425 = vadd.f32 %v1421, 0.5
  %v1426 = vadd.f32 %v1422, 0.5
  %v1427 = vtanh.pop %v1407
  %v1428 = vtanh.pop %v1408
  %v1429 = vtanh.pop %v1409
  %v1430 = vtanh.pop %v1410
  %v1431 = vmul.f32 %v1423, %v1326
  %v1432 = vmul.f32 %v1424, %v1327
  %v1433 = vmul.f32 %v1425, %v1328
  %v1434 = vmul.f32 %v1426, %v1329
  %1439 = vrot.lane.b32.xlu0 %v1427, 64
  %v1440 = vpop.permute.xlu0 %1439
  %1441 = vrot.lane.b32.xlu0 %v1428, 64
  %v1442 = vpop.permute.xlu0 %1441
  %1443 = vrot.lane.b32.xlu0 %v1429, 64
  %v1444 = vpop.permute.xlu0 %1443
  %1445 = vrot.lane.b32.xlu0 %v1430, 64
  %v1446 = vpop.permute.xlu0 %1445
  %v1451 = vmul.f32 %v1423, %v1440
  %v1452 = vmul.f32 %v1424, %v1442
  %v1453 = vmul.f32 %v1425, %v1444
  %v1454 = vmul.f32 %v1426, %v1446
  %1459 = vrot.lane.b32.xlu0 %v1451, 32
  %v1460 = vpop.permute.xlu0 %1459
  %1461 = vrot.lane.b32.xlu0 %v1452, 32
  %v1462 = vpop.permute.xlu0 %1461
  %1463 = vrot.lane.b32.xlu0 %v1453, 32
  %v1464 = vpop.permute.xlu0 %1463
  %1465 = vrot.lane.b32.xlu0 %v1454, 32
  %v1466 = vpop.permute.xlu0 %1465
  %v1471 = vadd.f32 %v1431, %v1460
  %v1472 = vadd.f32 %v1432, %v1462
  %v1473 = vadd.f32 %v1433, %v1464
  %v1474 = vadd.f32 %v1434, %v1466
  %v1475 = vtanh.pop %v1471
  %v1476 = vtanh.pop %v1472
  %v1477 = vtanh.pop %v1473
  %v1478 = vtanh.pop %v1474
  %1483 = vrot.lane.b32.xlu0 %v1475, 64
  %v1484 = vpop.permute.xlu0 %1483
  %1485 = vrot.lane.b32.xlu0 %v1476, 64
  %v1486 = vpop.permute.xlu0 %1485
  %1487 = vrot.lane.b32.xlu0 %v1477, 64
  %v1488 = vpop.permute.xlu0 %1487
  %1489 = vrot.lane.b32.xlu0 %v1478, 64
  %v1490 = vpop.permute.xlu0 %1489
  %v1495 = vmul.f32 %v1423, %v1484
  %v1496 = vmul.f32 %v1424, %v1486
  %v1497 = vmul.f32 %v1425, %v1488
  %v1498 = vmul.f32 %v1426, %v1490
  %v1499 = vmax.f32 %v1495, 0.0
  %v1500 = vmax.f32 %v1496, 0.0
  %v1501 = vmax.f32 %v1497, 0.0
  %v1502 = vmax.f32 %v1498, 0.0
  %v1503 = vld [vmem:[%s6] sm:$0xff]
  %v1504 = vld [vmem:[%s6 + $0x8] sm:$0xff]
  %v1505 = vld [vmem:[%s6 + $0x10] sm:$0xff]
  %v1506 = vld [vmem:[%s6 + $0x18] sm:$0xff]
  %v1507 = vld [vmem:[%s7] sm:$0x1]
  %v1509 = vperm.slane %v1507, 0
  %1515 = vrot.lane.b32.xlu0 %v1499, 32
  %v1516 = vpop.permute.xlu0 %1515
  %1517 = vrot.lane.b32.xlu0 %v1500, 32
  %v1518 = vpop.permute.xlu0 %1517
  %1519 = vrot.lane.b32.xlu0 %v1501, 32
  %v1520 = vpop.permute.xlu0 %1519
  %1521 = vrot.lane.b32.xlu0 %v1502, 32
  %v1522 = vpop.permute.xlu0 %1521
  %v1523 = vsel %vm359, %v1516, 0
  %v1525 = vsel %vm359, %v1518, 0
  %v1527 = vsel %vm359, %v1520, 0
  %v1529 = vsel %vm359, %v1522, 0
  %1531 = vmatpush.msra.mxu0 0.0
  %1532 = vmatpush.msra.mxu0 0.0
  %1533 = vmatpush.msra.mxu0 0.0
  %1534 = vmatpush.msra.mxu0 0.0
  %1535 = vmatpush.msra.mxu0 0.0
  %1536 = vmatpush.msra.mxu0 0.0
  %1537 = vmatpush.msra.mxu0 0.0
  %1538 = vmatpush.msra.mxu0 0.0
  %1539 = vmatpush.msra.mxu0 0.0
  %1540 = vmatpush.msra.mxu0 0.0
  %1541 = vmatpush.msra.mxu0 0.0
  %1542 = vmatpush.msra.mxu0 0.0
  %1543 = vmatpush.msra.mxu0 %v1506
  %1544 = vmatpush.msra.mxu0 %v1505
  %1545 = vmatpush.msra.mxu0 %v1504
  %1546 = vmatpush.msra.mxu0 %v1503
  %1547 = vmatmul.f32.gmra.mxu0 %v1523
  %v1548 = vpop.f32.mrf.mxu0
  %v1549 = vadd.f32 %v1509, %v1548
  %1550 = vmatmul.f32.gmra.mxu0 %v1525
  %v1551 = vpop.f32.mrf.mxu0
  %v1552 = vadd.f32 %v1509, %v1551
  %1553 = vmatmul.f32.gmra.mxu0 %v1527
  %v1554 = vpop.f32.mrf.mxu0
  %v1555 = vadd.f32 %v1509, %v1554
  %1556 = vmatmul.f32.gmra.mxu0 %v1529
  %v1557 = vpop.f32.mrf.mxu0
  %v1558 = vadd.f32 %v1509, %v1557
  %1559 = vdwg.mxu0
  %v1560 = vld [vmem:[%s8] sm:$0xff]
  %v1561 = vld [vmem:[%s8 + $0x8] sm:$0xff]
  %v1562 = vld [vmem:[%s8 + $0x10] sm:$0xff]
  %v1563 = vld [vmem:[%s8 + $0x18] sm:$0xff]
  %v1564 = vld [vmem:[%s8 + $0x20] sm:$0xff]
  %v1565 = vld [vmem:[%s8 + $0x28] sm:$0xff]
  %v1566 = vld [vmem:[%s8 + $0x30] sm:$0xff]
  %v1567 = vld [vmem:[%s8 + $0x38] sm:$0xff]
  %v1568 = vld [vmem:[%s8 + $0x40] sm:$0xff]
  %v1569 = vld [vmem:[%s8 + $0x48] sm:$0xff]
  %v1570 = vld [vmem:[%s8 + $0x50] sm:$0xff]
  %v1571 = vld [vmem:[%s8 + $0x58] sm:$0xff]
  %v1572 = vld [vmem:[%s8 + $0x60] sm:$0xff]
  %v1573 = vld [vmem:[%s8 + $0x68] sm:$0xff]
  %v1574 = vld [vmem:[%s8 + $0x70] sm:$0xff]
  %v1575 = vld [vmem:[%s8 + $0x78] sm:$0xff]
  %v1576 = vld [vmem:[%s9] sm:$0x1]
  %v1578 = vperm.slane %v1576, 0
  %1580 = vmatpush.msra.mxu0 %v1575
  %1581 = vmatpush.msra.mxu0 %v1574
  %1582 = vmatpush.msra.mxu0 %v1573
  %1583 = vmatpush.msra.mxu0 %v1572
  %1584 = vmatpush.msra.mxu0 %v1571
  %1585 = vmatpush.msra.mxu0 %v1570
  %1586 = vmatpush.msra.mxu0 %v1569
  %1587 = vmatpush.msra.mxu0 %v1568
  %1588 = vmatpush.msra.mxu0 %v1567
  %1589 = vmatpush.msra.mxu0 %v1566
  %1590 = vmatpush.msra.mxu0 %v1565
  %1591 = vmatpush.msra.mxu0 %v1564
  %1592 = vmatpush.msra.mxu0 %v1563
  %1593 = vmatpush.msra.mxu0 %v1562
  %1594 = vmatpush.msra.mxu0 %v1561
  %1595 = vmatpush.msra.mxu0 %v1560
  %1596 = vmatmul.f32.gmra.mxu0 %v1549
  %v1597 = vpop.f32.mrf.mxu0
  %v1598 = vadd.f32 %v1578, %v1597
  %1599 = vmatmul.f32.gmra.mxu0 %v1552
  %v1600 = vpop.f32.mrf.mxu0
  %v1601 = vadd.f32 %v1578, %v1600
  %1602 = vmatmul.f32.gmra.mxu0 %v1555
  %v1603 = vpop.f32.mrf.mxu0
  %v1604 = vadd.f32 %v1578, %v1603
  %1605 = vmatmul.f32.gmra.mxu0 %v1558
  %v1606 = vpop.f32.mrf.mxu0
  %v1607 = vadd.f32 %v1578, %v1606
  %1608 = vdwg.mxu0
  %v1609 = vmax.f32 %v1598, 0.0
  %v1610 = vmax.f32 %v1601, 0.0
  %v1611 = vmax.f32 %v1604, 0.0
  %v1612 = vmax.f32 %v1607, 0.0
  %v1613 = vld [vmem:[%s10] sm:$0xff]
  %v1614 = vld [vmem:[%s10 + $0x8] sm:$0xff]
  %v1615 = vld [vmem:[%s10 + $0x10] sm:$0xff]
  %v1616 = vld [vmem:[%s10 + $0x18] sm:$0xff]
  %v1617 = vld [vmem:[#allocation4] sm:$0x1]
  %v1619 = vperm.slane %v1617, 0
  %v1622 = vsel %vm359, %v1609, 0
  %v1625 = vsel %vm359, %v1610, 0
  %v1628 = vsel %vm359, %v1611, 0
  %v1631 = vsel %vm359, %v1612, 0
  %1633 = vmatpush.msra.mxu0 0.0
  %1634 = vmatpush.msra.mxu0 0.0
  %1635 = vmatpush.msra.mxu0 0.0
  %1636 = vmatpush.msra.mxu0 0.0
  %1637 = vmatpush.msra.mxu0 0.0
  %1638 = vmatpush.msra.mxu0 0.0
  %1639 = vmatpush.msra.mxu0 0.0
  %1640 = vmatpush.msra.mxu0 0.0
  %1641 = vmatpush.msra.mxu0 0.0
  %1642 = vmatpush.msra.mxu0 0.0
  %1643 = vmatpush.msra.mxu0 0.0
  %1644 = vmatpush.msra.mxu0 0.0
  %1645 = vmatpush.msra.mxu0 %v1616
  %1646 = vmatpush.msra.mxu0 %v1615
  %1647 = vmatpush.msra.mxu0 %v1614
  %1648 = vmatpush.msra.mxu0 %v1613
  %1649 = vmatmul.f32.gmra.mxu0 %v1622
  %v1650 = vpop.f32.mrf.mxu0
  %v1651 = vadd.f32 %v1619, %v1650
  %1652 = vmatmul.f32.gmra.mxu0 %v1625
  %v1653 = vpop.f32.mrf.mxu0
  %v1654 = vadd.f32 %v1619, %v1653
  %1655 = vmatmul.f32.gmra.mxu0 %v1628
  %v1656 = vpop.f32.mrf.mxu0
  %v1657 = vadd.f32 %v1619, %v1656
  %1658 = vmatmul.f32.gmra.mxu0 %v1631
  %v1659 = vpop.f32.mrf.mxu0
  %v1660 = vadd.f32 %v1619, %v1659
  %1661 = vdwg.mxu0
  %vm1662 = vcmask 7168
  %1663 = vst.msk [vmem:[%s19] sm:$0xff] %vm1662, %v1651
  %1664 = vst.msk [vmem:[%s19 + $0x8] sm:$0xff] %vm1662, %v1654
  %1665 = vst.msk [vmem:[%s19 + $0x10] sm:$0xff] %vm1662, %v1657
  %1666 = vst.msk [vmem:[%s19 + $0x18] sm:$0xff] %vm1662, %v1660
  %v1667 = vld [vmem:[%s2] sm:$0xff]
  %v1669 = vsel %vm359, %v1667, 0
  %1671 = vmatpush.msra.mxu0 0.0
  %1672 = vmatpush.msra.mxu0 0.0
  %1673 = vmatpush.msra.mxu0 0.0
  %1674 = vmatpush.msra.mxu0 0.0
  %1675 = vmatpush.msra.mxu0 0.0
  %1676 = vmatpush.msra.mxu0 0.0
  %1677 = vmatpush.msra.mxu0 0.0
  %1678 = vmatpush.msra.mxu0 0.0
  %1679 = vmatpush.msra.mxu0 0.0
  %1680 = vmatpush.msra.mxu0 0.0
  %1681 = vmatpush.msra.mxu0 0.0
  %1682 = vmatpush.msra.mxu0 0.0
  %1683 = vmatpush.msra.mxu0 %v1612
  %1684 = vmatpush.msra.mxu0 %v1611
  %1685 = vmatpush.msra.mxu0 %v1610
  %1686 = vmatpush.msra.mxu0 %v1609
  %1687 = vmatmul.f32.gmra.mxu0 %v1669
  %v1688 = vpop.f32.mrf.mxu0
  %v1689 = vadd.f32 0.0, %v1688
  %1690 = vdwg.mxu0
  %v1691 = vld [vmem:[%s1] sm:$0xff]
  %v1692 = vld [vmem:[%s1 + $0x8] sm:$0xff]
  %v1693 = vld [vmem:[%s1 + $0x10] sm:$0xff]
  %v1694 = vld [vmem:[%s1 + $0x18] sm:$0xff]
  %v1695 = vld [vmem:[%s1 + $0x20] sm:$0xff]
  %v1696 = vld [vmem:[%s1 + $0x28] sm:$0xff]
  %v1697 = vld [vmem:[%s12] sm:$0x1f]
  %v1698 = vld [vmem:[%s14] sm:$0x1]
  %v1700 = vperm.slane %v1698, 0
  %v1703 = vsel %vm105, %v1691, 0
  %v1706 = vsel %vm105, %v1692, 0
  %v1709 = vsel %vm105, %v1693, 0
  %v1712 = vsel %vm105, %v1694, 0
  %v1715 = vsel %vm105, %v1695, 0
  %v1718 = vsel %vm105, %v1696, 0
  %v1721 = vsel %vm202, %v1697, 0
  %1723 = vmatpush.msra.mxu0 0.0
  %1724 = vmatpush.msra.mxu0 0.0
  %1725 = vmatpush.msra.mxu0 0.0
  %1726 = vmatpush.msra.mxu0 0.0
  %1727 = vmatpush.msra.mxu0 0.0
  %1728 = vmatpush.msra.mxu0 0.0
  %1729 = vmatpush.msra.mxu0 0.0
  %1730 = vmatpush.msra.mxu0 0.0
  %1731 = vmatpush.msra.mxu0 0.0
  %1732 = vmatpush.msra.mxu0 0.0
  %1733 = vmatpush.msra.mxu0 0.0
  %1734 = vmatpush.msra.mxu0 0.0
  %1735 = vmatpush.msra.mxu0 0.0
  %1736 = vmatpush.msra.mxu0 0.0
  %1737 = vmatpush.msra.mxu0 0.0
  %1738 = vmatpush.msra.mxu0 %v1721
  %1739 = vmatmul.f32.gmra.mxu0 %v1703
  %v1740 = vpop.f32.mrf.mxu0
  %v1741 = vadd.f32 %v1700, %v1740
  %1742 = vmatmul.f32.gmra.mxu0 %v1706
  %v1743 = vpop.f32.mrf.mxu0
  %v1744 = vadd.f32 %v1700, %v1743
  %1745 = vmatmul.f32.gmra.mxu0 %v1709
  %v1746 = vpop.f32.mrf.mxu0
  %v1747 = vadd.f32 %v1700, %v1746
  %1748 = vmatmul.f32.gmra.mxu0 %v1712
  %v1749 = vpop.f32.mrf.mxu0
  %v1750 = vadd.f32 %v1700, %v1749
  %1751 = vmatmul.f32.gmra.mxu0 %v1715
  %v1752 = vpop.f32.mrf.mxu0
  %v1753 = vadd.f32 %v1700, %v1752
  %1754 = vmatmul.f32.gmra.mxu0 %v1718
  %v1755 = vpop.f32.mrf.mxu0
  %v1756 = vadd.f32 %v1700, %v1755
  %1757 = vdwg.mxu0
  %1758 = vst [vmem:[#allocation3] sm:$0xff] %v1741
  %1759 = vst [vmem:[#allocation3 + $0x8] sm:$0xff] %v1744
  %1760 = vst [vmem:[#allocation3 + $0x10] sm:$0xff] %v1747
  %1761 = vst [vmem:[#allocation3 + $0x18] sm:$0xff] %v1750
  %1762 = vst [vmem:[#allocation3 + $0x20] sm:$0xff] %v1753
  %1763 = vst [vmem:[#allocation3 + $0x28] sm:$0xff] %v1756
  %v1764 = vld [vmem:[%s13] sm:$0xff]
  %v1765 = vld [vmem:[%s13 + $0x8] sm:$0xff]
  %v1766 = vld [vmem:[%s13 + $0x10] sm:$0xff]
  %v1767 = vld [vmem:[%s13 + $0x18] sm:$0xff]
  %v1768 = vld [vmem:[#allocation3] sm:$0xff]
  %v1770 = vsel %vm359, %v1689, 0
  %1772 = vmatpush.msra.mxu0 0.0
  %1773 = vmatpush.msra.mxu0 0.0
  %1774 = vmatpush.msra.mxu0 0.0
  %1775 = vmatpush.msra.mxu0 0.0
  %1776 = vmatpush.msra.mxu0 0.0
  %1777 = vmatpush.msra.mxu0 0.0
  %1778 = vmatpush.msra.mxu0 0.0
  %1779 = vmatpush.msra.mxu0 0.0
  %1780 = vmatpush.msra.mxu0 0.0
  %1781 = vmatpush.msra.mxu0 0.0
  %1782 = vmatpush.msra.mxu0 0.0
  %1783 = vmatpush.msra.mxu0 0.0
  %1784 = vmatpush.msra.mxu0 %v1767
  %1785 = vmatpush.msra.mxu0 %v1766
  %1786 = vmatpush.msra.mxu0 %v1765
  %1787 = vmatpush.msra.mxu0 %v1764
  %1788 = vmatmul.f32.gmra.mxu0 %v1770
  %v1789 = vpop.f32.mrf.mxu0
  %v1790 = vadd.f32 0.0, %v1789
  %1791 = vdwg.mxu0
  %v1792 = vadd.f32 %v1768, %v1790
  %v1793 = vmul.f32 %v1792, 0.5
  %v1794 = vtanh.pop %v1793
  %v1795 = vmul.f32 %v1794, 0.5
  %v1796 = vadd.f32 %v1795, 0.5
  %v1797 = vtanh.pop %v1792
  %v1798 = vmul.f32 %v1796, 0.0
  %1800 = vrot.lane.b32.xlu0 %v1797, 64
  %v1801 = vpop.permute.xlu0 %1800
  %v1803 = vmul.f32 %v1796, %v1801
  %1805 = vrot.lane.b32.xlu0 %v1803, 32
  %v1806 = vpop.permute.xlu0 %1805
  %v1808 = vadd.f32 %v1798, %v1806
  %v1809 = vtanh.pop %v1808
  %1811 = vrot.lane.b32.xlu0 %v1809, 64
  %v1812 = vpop.permute.xlu0 %1811
  %v1814 = vmul.f32 %v1796, %v1812
  %v1815 = vld [vmem:[#allocation3 + $0x8] sm:$0xff]
  %1817 = vrot.lane.b32.xlu0 %v1814, 32
  %v1818 = vpop.permute.xlu0 %1817
  %v1819 = vsel %vm359, %v1818, 0
  %1821 = vmatpush.msra.mxu0 0.0
  %1822 = vmatpush.msra.mxu0 0.0
  %1823 = vmatpush.msra.mxu0 0.0
  %1824 = vmatpush.msra.mxu0 0.0
  %1825 = vmatpush.msra.mxu0 0.0
  %1826 = vmatpush.msra.mxu0 0.0
  %1827 = vmatpush.msra.mxu0 0.0
  %1828 = vmatpush.msra.mxu0 0.0
  %1829 = vmatpush.msra.mxu0 0.0
  %1830 = vmatpush.msra.mxu0 0.0
  %1831 = vmatpush.msra.mxu0 0.0
  %1832 = vmatpush.msra.mxu0 0.0
  %1833 = vmatpush.msra.mxu0 %v1767
  %1834 = vmatpush.msra.mxu0 %v1766
  %1835 = vmatpush.msra.mxu0 %v1765
  %1836 = vmatpush.msra.mxu0 %v1764
  %1837 = vmatmul.f32.gmra.mxu0 %v1819
  %v1838 = vpop.f32.mrf.mxu0
  %v1839 = vadd.f32 0.0, %v1838
  %1840 = vdwg.mxu0
  %v1841 = vadd.f32 %v1815, %v1839
  %v1842 = vmul.f32 %v1841, 0.5
  %v1843 = vtanh.pop %v1842
  %v1844 = vmul.f32 %v1843, 0.5
  %v1845 = vadd.f32 %v1844, 0.5
  %v1846 = vtanh.pop %v1841
  %v1847 = vmul.f32 %v1845, %v1808
  %1849 = vrot.lane.b32.xlu0 %v1846, 64
  %v1850 = vpop.permute.xlu0 %1849
  %v1852 = vmul.f32 %v1845, %v1850
  %1854 = vrot.lane.b32.xlu0 %v1852, 32
  %v1855 = vpop.permute.xlu0 %1854
  %v1857 = vadd.f32 %v1847, %v1855
  %v1858 = vtanh.pop %v1857
  %1860 = vrot.lane.b32.xlu0 %v1858, 64
  %v1861 = vpop.permute.xlu0 %1860
  %v1863 = vmul.f32 %v1845, %v1861
  %v1864 = vld [vmem:[#allocation3 + $0x10] sm:$0xff]
  %1866 = vrot.lane.b32.xlu0 %v1863, 32
  %v1867 = vpop.permute.xlu0 %1866
  %v1868 = vsel %vm359, %v1867, 0
  %1870 = vmatpush.msra.mxu0 0.0
  %1871 = vmatpush.msra.mxu0 0.0
  %1872 = vmatpush.msra.mxu0 0.0
  %1873 = vmatpush.msra.mxu0 0.0
  %1874 = vmatpush.msra.mxu0 0.0
  %1875 = vmatpush.msra.mxu0 0.0
  %1876 = vmatpush.msra.mxu0 0.0
  %1877 = vmatpush.msra.mxu0 0.0
  %1878 = vmatpush.msra.mxu0 0.0
  %1879 = vmatpush.msra.mxu0 0.0
  %1880 = vmatpush.msra.mxu0 0.0
  %1881 = vmatpush.msra.mxu0 0.0
  %1882 = vmatpush.msra.mxu0 %v1767
  %1883 = vmatpush.msra.mxu0 %v1766
  %1884 = vmatpush.msra.mxu0 %v1765
  %1885 = vmatpush.msra.mxu0 %v1764
  %1886 = vmatmul.f32.gmra.mxu0 %v1868
  %v1887 = vpop.f32.mrf.mxu0
  %v1888 = vadd.f32 0.0, %v1887
  %1889 = vdwg.mxu0
  %v1890 = vadd.f32 %v1864, %v1888
  %v1891 = vmul.f32 %v1890, 0.5
  %v1892 = vtanh.pop %v1891
  %v1893 = vmul.f32 %v1892, 0.5
  %v1894 = vadd.f32 %v1893, 0.5
  %v1895 = vtanh.pop %v1890
  %v1896 = vmul.f32 %v1894, %v1857
  %1898 = vrot.lane.b32.xlu0 %v1895, 64
  %v1899 = vpop.permute.xlu0 %1898
  %v1901 = vmul.f32 %v1894, %v1899
  %1903 = vrot.lane.b32.xlu0 %v1901, 32
  %v1904 = vpop.permute.xlu0 %1903
  %v1906 = vadd.f32 %v1896, %v1904
  %v1907 = vtanh.pop %v1906
  %1909 = vrot.lane.b32.xlu0 %v1907, 64
  %v1910 = vpop.permute.xlu0 %1909
  %v1912 = vmul.f32 %v1894, %v1910
  %v1913 = vld [vmem:[#allocation3 + $0x18] sm:$0xff]
  %1915 = vrot.lane.b32.xlu0 %v1912, 32
  %v1916 = vpop.permute.xlu0 %1915
  %v1917 = vsel %vm359, %v1916, 0
  %1919 = vmatpush.msra.mxu0 0.0
  %1920 = vmatpush.msra.mxu0 0.0
  %1921 = vmatpush.msra.mxu0 0.0
  %1922 = vmatpush.msra.mxu0 0.0
  %1923 = vmatpush.msra.mxu0 0.0
  %1924 = vmatpush.msra.mxu0 0.0
  %1925 = vmatpush.msra.mxu0 0.0
  %1926 = vmatpush.msra.mxu0 0.0
  %1927 = vmatpush.msra.mxu0 0.0
  %1928 = vmatpush.msra.mxu0 0.0
  %1929 = vmatpush.msra.mxu0 0.0
  %1930 = vmatpush.msra.mxu0 0.0
  %1931 = vmatpush.msra.mxu0 %v1767
  %1932 = vmatpush.msra.mxu0 %v1766
  %1933 = vmatpush.msra.mxu0 %v1765
  %1934 = vmatpush.msra.mxu0 %v1764
  %1935 = vmatmul.f32.gmra.mxu0 %v1917
  %v1936 = vpop.f32.mrf.mxu0
  %v1937 = vadd.f32 0.0, %v1936
  %1938 = vdwg.mxu0
  %v1939 = vadd.f32 %v1913, %v1937
  %v1940 = vmul.f32 %v1939, 0.5
  %v1941 = vtanh.pop %v1940
  %v1942 = vmul.f32 %v1941, 0.5
  %v1943 = vadd.f32 %v1942, 0.5
  %v1944 = vtanh.pop %v1939
  %v1945 = vmul.f32 %v1943, %v1906
  %1947 = vrot.lane.b32.xlu0 %v1944, 64
  %v1948 = vpop.permute.xlu0 %1947
  %v1950 = vmul.f32 %v1943, %v1948
  %1952 = vrot.lane.b32.xlu0 %v1950, 32
  %v1953 = vpop.permute.xlu0 %1952
  %v1955 = vadd.f32 %v1945, %v1953
  %v1956 = vtanh.pop %v1955
  %1958 = vrot.lane.b32.xlu0 %v1956, 64
  %v1959 = vpop.permute.xlu0 %1958
  %v1961 = vmul.f32 %v1943, %v1959
  %v1962 = vld [vmem:[#allocation3 + $0x20] sm:$0xff]
  %1964 = vrot.lane.b32.xlu0 %v1961, 32
  %v1965 = vpop.permute.xlu0 %1964
  %v1966 = vsel %vm359, %v1965, 0
  %1968 = vmatpush.msra.mxu0 0.0
  %1969 = vmatpush.msra.mxu0 0.0
  %1970 = vmatpush.msra.mxu0 0.0
  %1971 = vmatpush.msra.mxu0 0.0
  %1972 = vmatpush.msra.mxu0 0.0
  %1973 = vmatpush.msra.mxu0 0.0
  %1974 = vmatpush.msra.mxu0 0.0
  %1975 = vmatpush.msra.mxu0 0.0
  %1976 = vmatpush.msra.mxu0 0.0
  %1977 = vmatpush.msra.mxu0 0.0
  %1978 = vmatpush.msra.mxu0 0.0
  %1979 = vmatpush.msra.mxu0 0.0
  %1980 = vmatpush.msra.mxu0 %v1767
  %1981 = vmatpush.msra.mxu0 %v1766
  %1982 = vmatpush.msra.mxu0 %v1765
  %1983 = vmatpush.msra.mxu0 %v1764
  %1984 = vmatmul.f32.gmra.mxu0 %v1966
  %v1985 = vpop.f32.mrf.mxu0
  %v1986 = vadd.f32 0.0, %v1985
  %1987 = vdwg.mxu0
  %v1988 = vadd.f32 %v1962, %v1986
  %v1989 = vmul.f32 %v1988, 0.5
  %v1990 = vtanh.pop %v1989
  %v1991 = vmul.f32 %v1990, 0.5
  %v1992 = vadd.f32 %v1991, 0.5
  %v1993 = vtanh.pop %v1988
  %v1994 = vmul.f32 %v1992, %v1955
  %1996 = vrot.lane.b32.xlu0 %v1993, 64
  %v1997 = vpop.permute.xlu0 %1996
  %v1999 = vmul.f32 %v1992, %v1997
  %2001 = vrot.lane.b32.xlu0 %v1999, 32
  %v2002 = vpop.permute.xlu0 %2001
  %v2004 = vadd.f32 %v1994, %v2002
  %v2005 = vtanh.pop %v2004
  %2007 = vrot.lane.b32.xlu0 %v2005, 64
  %v2008 = vpop.permute.xlu0 %2007
  %v2010 = vmul.f32 %v1992, %v2008
  %v2011 = vld [vmem:[#allocation3 + $0x28] sm:$0xff]
  %2013 = vrot.lane.b32.xlu0 %v2010, 32
  %v2014 = vpop.permute.xlu0 %2013
  %v2015 = vsel %vm359, %v2014, 0
  %2017 = vmatpush.msra.mxu0 0.0
  %2018 = vmatpush.msra.mxu0 0.0
  %2019 = vmatpush.msra.mxu0 0.0
  %2020 = vmatpush.msra.mxu0 0.0
  %2021 = vmatpush.msra.mxu0 0.0
  %2022 = vmatpush.msra.mxu0 0.0
  %2023 = vmatpush.msra.mxu0 0.0
  %2024 = vmatpush.msra.mxu0 0.0
  %2025 = vmatpush.msra.mxu0 0.0
  %2026 = vmatpush.msra.mxu0 0.0
  %2027 = vmatpush.msra.mxu0 0.0
  %2028 = vmatpush.msra.mxu0 0.0
  %2029 = vmatpush.msra.mxu0 %v1767
  %2030 = vmatpush.msra.mxu0 %v1766
  %2031 = vmatpush.msra.mxu0 %v1765
  %2032 = vmatpush.msra.mxu0 %v1764
  %2033 = vmatmul.f32.gmra.mxu0 %v2015
  %v2034 = vpop.f32.mrf.mxu0
  %v2035 = vadd.f32 0.0, %v2034
  %2036 = vdwg.mxu0
  %v2037 = vadd.f32 %v2011, %v2035
  %v2038 = vmul.f32 %v2037, 0.5
  %v2039 = vtanh.pop %v2038
  %v2040 = vmul.f32 %v2039, 0.5
  %v2041 = vadd.f32 %v2040, 0.5
  %v2042 = vtanh.pop %v2037
  %v2043 = vmul.f32 %v2041, %v2004
  %2045 = vrot.lane.b32.xlu0 %v2042, 64
  %v2046 = vpop.permute.xlu0 %2045
  %v2048 = vmul.f32 %v2041, %v2046
  %2050 = vrot.lane.b32.xlu0 %v2048, 32
  %v2051 = vpop.permute.xlu0 %2050
  %v2053 = vadd.f32 %v2043, %v2051
  %v2054 = vtanh.pop %v2053
  %2056 = vrot.lane.b32.xlu0 %v2054, 64
  %v2057 = vpop.permute.xlu0 %2056
  %v2059 = vmul.f32 %v2041, %v2057
  %v2060 = vmax.f32 %v2059, 0.0
  %v2061 = vld [vmem:[%s15] sm:$0xff]
  %v2062 = vld [vmem:[%s15 + $0x8] sm:$0xff]
  %v2063 = vld [vmem:[%s15 + $0x10] sm:$0xff]
  %v2064 = vld [vmem:[%s15 + $0x18] sm:$0xff]
  %v2065 = vld [vmem:[%s16] sm:$0x1]
  %v2067 = vperm.slane %v2065, 0
  %2070 = vrot.lane.b32.xlu0 %v2060, 32
  %v2071 = vpop.permute.xlu0 %2070
  %v2072 = vsel %vm359, %v2071, 0
  %2074 = vmatpush.msra.mxu0 0.0
  %2075 = vmatpush.msra.mxu0 0.0
  %2076 = vmatpush.msra.mxu0 0.0
  %2077 = vmatpush.msra.mxu0 0.0
  %2078 = vmatpush.msra.mxu0 0.0
  %2079 = vmatpush.msra.mxu0 0.0
  %2080 = vmatpush.msra.mxu0 0.0
  %2081 = vmatpush.msra.mxu0 0.0
  %2082 = vmatpush.msra.mxu0 0.0
  %2083 = vmatpush.msra.mxu0 0.0
  %2084 = vmatpush.msra.mxu0 0.0
  %2085 = vmatpush.msra.mxu0 0.0
  %2086 = vmatpush.msra.mxu0 %v2064
  %2087 = vmatpush.msra.mxu0 %v2063
  %2088 = vmatpush.msra.mxu0 %v2062
  %2089 = vmatpush.msra.mxu0 %v2061
  %2090 = vmatmul.f32.gmra.mxu0 %v2072
  %v2091 = vpop.f32.mrf.mxu0
  %v2092 = vadd.f32 %v2067, %v2091
  %2093 = vdwg.mxu0
  %v2094 = vmax.f32 %v2092, 0.0
  %v2095 = vld [vmem:[%s17] sm:$0xff]
  %v2096 = vld [vmem:[%s17 + $0x8] sm:$0xff]
  %v2097 = vld [vmem:[%s17 + $0x10] sm:$0xff]
  %v2098 = vld [vmem:[%s17 + $0x18] sm:$0xff]
  %v2099 = vld [vmem:[%s17 + $0x20] sm:$0xff]
  %v2100 = vld [vmem:[%s17 + $0x28] sm:$0xff]
  %v2101 = vld [vmem:[%s17 + $0x30] sm:$0xff]
  %v2102 = vld [vmem:[%s17 + $0x38] sm:$0xff]
  %v2103 = vld [vmem:[%s17 + $0x40] sm:$0xff]
  %v2104 = vld [vmem:[%s17 + $0x48] sm:$0xff]
  %v2105 = vld [vmem:[%s17 + $0x50] sm:$0xff]
  %v2106 = vld [vmem:[%s17 + $0x58] sm:$0xff]
  %v2107 = vld [vmem:[%s17 + $0x60] sm:$0xff]
  %v2108 = vld [vmem:[%s17 + $0x68] sm:$0xff]
  %v2109 = vld [vmem:[%s17 + $0x70] sm:$0xff]
  %v2110 = vld [vmem:[%s17 + $0x78] sm:$0xff]
  %v2111 = vld [vmem:[#allocation5] sm:$0x1]
  %v2113 = vperm.slane %v2111, 0
  %2115 = vmatpush.msra.mxu0 %v2110
  %2116 = vmatpush.msra.mxu0 %v2109
  %2117 = vmatpush.msra.mxu0 %v2108
  %2118 = vmatpush.msra.mxu0 %v2107
  %2119 = vmatpush.msra.mxu0 %v2106
  %2120 = vmatpush.msra.mxu0 %v2105
  %2121 = vmatpush.msra.mxu0 %v2104
  %2122 = vmatpush.msra.mxu0 %v2103
  %2123 = vmatpush.msra.mxu0 %v2102
  %2124 = vmatpush.msra.mxu0 %v2101
  %2125 = vmatpush.msra.mxu0 %v2100
  %2126 = vmatpush.msra.mxu0 %v2099
  %2127 = vmatpush.msra.mxu0 %v2098
  %2128 = vmatpush.msra.mxu0 %v2097
  %2129 = vmatpush.msra.mxu0 %v2096
  %2130 = vmatpush.msra.mxu0 %v2095
  %2131 = vmatmul.f32.gmra.mxu0 %v2094
  %v2132 = vpop.f32.mrf.mxu0
  %v2133 = vadd.f32 %v2113, %v2132
  %2134 = vdwg.mxu0
  %2135 = vst.msk [vmem:[%s20] sm:$0xff] %vm1662, %v2133
  // Predicated region
  $region78: #{netz_forward.1} parent=0 // pred_check
    _
  $region79: #{netz_forward.1} parent=0 // pred_check_branch
    %2137 = sbr.rel (0) target = $region81
  $region80: #{netz_forward.1} parent=0 // pred_region
    _
  $region81: #{netz_forward.1} parent=0 // pred_fallthru
    _
  // Predicated region
  $region82: #{netz_forward.1} parent=0 // pred_check
    _
  $region83: #{netz_forward.1} parent=0 // pred_check_branch
    %2139 = sbr.rel (0) target = $region85
  $region84: #{netz_forward.1} parent=0 // pred_region
    _
  $region85: #{netz_forward.1} parent=0 // pred_fallthru
    _
  // Predicated region
  $region86: #{netz_forward.1} parent=0 // pred_check
    _
  $region87: #{netz_forward.1} parent=0 // pred_check_branch
    %2141 = sbr.rel (0) target = $region89
  $region88: #{netz_forward.1} parent=0 // pred_region
    _
  $region89: #{netz_forward.1} parent=0 // pred_fallthru
    _
  // Predicated region
  $region90: #{netz_forward.1} parent=0 // pred_check
    _
  $region91: #{netz_forward.1} parent=0 // pred_check_branch
    %2143 = sbr.rel (0) target = $region93
  $region92: #{netz_forward.1} parent=0 // pred_region
    _
  $region93: #{netz_forward.1} parent=0 // pred_fallthru
    _

</llo_original>
